<compile_context>
chip_gen: v7x
topology: tpu7x:2x2x1
jax: 0.10.0
libtpu: 0.0.40
codegen_flags: <defaults>
</compile_context>

<pallas_src>
import functools

import jax
import jax.numpy as jnp
from jax.experimental import pallas as pl
from jax.experimental.pallas import tpu as pltpu


def _round_up(x, m):
    return ((x + m - 1) // m) * m


def _wavenet_kernel(x_ref, w_in_ref, b_in_ref,
                    w_hid_ref, b_hid_ref,
                    w_rm_ref, b_rm_ref,
                    o_ref,
                    carry_ref, *, dilations, C, T_blk, D_carry, compute_dtype):
    """One (batch, time-block) step of the WaveNet forward.

    x_ref     : (1, 1, T_blk)   input waveform block
    w_in_ref  : (C, 1)          input_layer 1x1 conv weight (f32)
    b_in_ref  : (C, 1)          (f32)
    w_hid_ref : (L, 2C, 2C)     fused hidden conv weight [tap t-d | tap t],
                                gate half pre-scaled by 0.5 (compute_dtype)
    b_hid_ref : (L, 2C, 1)      gate half pre-scaled by 0.5 (f32)
    w_rm_ref  : (L, C+1, C)     fused [residual 1x1 ; linear_mix slice] (compute_dtype)
    b_rm_ref  : (L, C+1, 1)     [b_res ; b_mix folded into layer 0 mix row] (f32)
    o_ref     : (1, 1, T_blk)
    carry_ref : (L, C, D_carry) last D_carry columns of each layer's input from
                                the previous time block (zeros at block 0)
    """
    t_blk = pl.program_id(1)

    # Reset the causal history at the first time block of each batch element.
    # NOTE: relies on the time axis being the LAST, sequential ("arbitrary")
    # grid axis so a sequence's blocks run back-to-back on one core.  Do not
    # reorder the grid or mark time "parallel".
    @pl.when(t_blk == 0)
    def _():
        carry_ref[...] = jnp.zeros_like(carry_ref)

    x = x_ref[0].astype(jnp.float32)                 # (1, T_blk)
    w_in = w_in_ref[...].astype(jnp.float32)         # (C, 1)
    b_in = b_in_ref[...].astype(jnp.float32)         # (C, 1)

    # input_layer: CausalConv1d(1 -> C, k=1) == outer product + bias.
    h = w_in * x + b_in                              # (C, T_blk) f32

    lane_aligned = (T_blk % 128 == 0)
    lane = jax.lax.broadcasted_iota(jnp.int32, (C, T_blk), 1)
    lane_head = jax.lax.broadcasted_iota(jnp.int32, (C, D_carry), 1)
    skip_acc = jnp.zeros((1, T_blk), jnp.float32)

    # TODO(synk): at realistic L (>=16) switch this static unroll to
    # lax.fori_loop with an SMEM dilation table to bound vreg live ranges.
    for l, d in enumerate(dilations):                # static unrolled layer loop
        xl = h                                       # (C, T_blk) layer input (f32)
        prev = carry_ref[l]                          # (C, D_carry) previous history
        carry_ref[l] = xl[:, T_blk - D_carry:]       # save history for next block

        # Causal shift: xs[:, t] = layer_input[:, global_t - d]
        # (zero before the start of the sequence).
        if lane_aligned:
            shifted = pltpu.roll(xl, shift=d, axis=1)      # positive axis (fix)
            hist = pltpu.roll(prev, shift=d, axis=1)
            if D_carry == T_blk:
                xs = jnp.where(lane < d, hist, shifted)
            else:
                head = jnp.where(lane_head < d, hist, shifted[:, :D_carry])
                xs = jnp.concatenate([head, shifted[:, D_carry:]], axis=1)
        else:
            # Lane-unaligned fallback (slice + concat copy; not hit in the demo).
            xs = jnp.concatenate([prev[:, D_carry - d:], xl[:, :T_blk - d]], axis=1)

        # Fused 2-tap dilated conv: one (2C, 2C) @ (2C, T_blk) matmul.
        x_cat = jnp.concatenate([xs, xl], axis=0).astype(compute_dtype)
        pre = (jnp.dot(w_hid_ref[l], x_cat,
                       preferred_element_type=jnp.float32)
               + b_hid_ref[l])                       # (2C, T_blk) f32

        # Single tanh over the full (2C, T_blk) block; sigmoid half was
        # pre-scaled by 0.5 in the wrapper: sigmoid(g) = 0.5 + 0.5*tanh(g/2).
        t = jnp.tanh(pre.astype(compute_dtype))
        gate = (t[:C, :] * (0.5 + 0.5 * t[C:, :])).astype(compute_dtype)

        # Fused residual 1x1 conv + this layer's linear_mix slice (+ biases):
        # rows 0..C-1 -> residual update, row C -> skip contribution.
        rm = (jnp.dot(w_rm_ref[l], gate, preferred_element_type=jnp.float32)
              + b_rm_ref[l])                         # (C+1, T_blk) f32
        h = rm[:C, :] + xl
        skip_acc = skip_acc + rm[C:, :]

    o_ref[0] = skip_acc.astype(o_ref.dtype)


def _vmem_capacity_bytes():
    """Physical VMEM of the attached TPU; conservative fallback (v7x = 64 MiB)."""
    try:
        return int(pltpu.get_tpu_info().vmem_capacity_bytes)
    except Exception:
        return 64 * 2 ** 20


def _estimate_vmem_bytes(C, L, t_blk, d_carry, weight_bytes):
    carry = L * C * d_carry * 4
    io = 2 * 2 * t_blk * 4                 # double-buffered 1-channel in/out blocks
    act = 8 * C * t_blk * 4                # live activation headroom
    return carry + io + act + 2 * weight_bytes


def _pick_t_block(T, C, L, max_d, weight_bytes, max_blk=4096):
    """Largest 128-multiple time block dividing T that fits the VMEM budget."""
    if T % 128 != 0:
        return T
    budget = _vmem_capacity_bytes() // 2   # leave headroom for compiler scratch
    blk = min(_round_up(min(T, max_blk), 128), T)
    while blk > 128:
        d_carry = min(_round_up(max_d, 128), blk)
        if T % blk == 0 and _estimate_vmem_bytes(C, L, blk, d_carry,
                                                 weight_bytes) <= budget:
            return blk
        blk -= 128
    return 128


def wavenet_pallas(x, params, dilations, t_block=None, compute_dtype=jnp.float32):
    """compute_dtype=jnp.bfloat16 -> bf16 MXU operands + bf16 tanh (v6e/v7x).
    Keep float32 on v5e (no bf16 VPU/EUP)."""
    B, _, T = x.shape
    C = params["w_in"].shape[0]
    L = len(dilations)
    max_d = max(dilations)

    # ---- fuse weights in the wrapper (cheap, done once per call) ----
    # Hidden conv taps [w(t-d) | w(t)] -> (L, 2C, 2C); gate half pre-scaled by
    # 0.5 so the kernel needs a single tanh per layer.
    scale = jnp.concatenate([jnp.ones((1, C, 1), jnp.float32),
                             jnp.full((1, C, 1), 0.5, jnp.float32)], axis=1)
    w_hid_cat = (jnp.concatenate([params["w_hid0"], params["w_hid1"]], axis=2)
                 * scale).astype(compute_dtype)
    b_hid = (params["b_hid"] * scale).astype(jnp.float32)
    # Residual conv + per-layer linear_mix slice -> (L, C+1, C).
    w_rm = jnp.concatenate([params["w_res"],
                            params["w_mix"].reshape(L, 1, C)],
                           axis=1).astype(compute_dtype)
    # Fold b_mix into layer 0's mix-row bias (no separate scalar VMEM tile).
    mix_bias = jnp.zeros((L, 1, 1), jnp.float32).at[0, 0, 0].set(
        params["b_mix"][0, 0])
    b_rm = jnp.concatenate([params["b_res"], mix_bias], axis=1)   # (L, C+1, 1)

    weight_bytes = sum(int(a.size) * a.dtype.itemsize for a in
                       (params["w_in"], params["b_in"], w_hid_cat, b_hid, w_rm, b_rm))

    if t_block is None:
        t_block = _pick_t_block(T, C, L, max_d, weight_bytes)
    assert T % t_block == 0, (T, t_block)
    assert max_d <= t_block, (max_d, t_block)

    # Causal-history carry: only the last D_carry columns of each layer's input.
    d_carry = min(_round_up(max_d, 128), t_block)
    num_t = T // t_block

    kernel = functools.partial(
        _wavenet_kernel, dilations=tuple(dilations), C=C, T_blk=t_block,
        D_carry=d_carry, compute_dtype=compute_dtype)

    def full_spec(shape):
        n = len(shape)
        return pl.BlockSpec(shape, lambda b, t, _n=n: (0,) * _n)

    est = _estimate_vmem_bytes(C, L, t_block, d_carry, weight_bytes)
    cp_kwargs = dict(dimension_semantics=("parallel", "arbitrary"))
    if est > 16 * 2 ** 20:
        cp_kwargs["vmem_limit_bytes"] = int(
            min(max(est * 5 // 4, 32 * 2 ** 20), _vmem_capacity_bytes()))

    # TODO(synk): single-buffer the constant weight inputs
    # (pipeline_mode=pl.Buffered(1)) once weight VMEM matters (C>=128, L>=20).
    return pl.pallas_call(
        kernel,
        out_shape=jax.ShapeDtypeStruct((B, 1, T), x.dtype),
        grid=(B, num_t),
        in_specs=[
            pl.BlockSpec((1, 1, t_block), lambda b, t: (b, 0, t)),
            full_spec(params["w_in"].shape),
            full_spec(params["b_in"].shape),
            full_spec(w_hid_cat.shape),
            full_spec(b_hid.shape),
            full_spec(w_rm.shape),
            full_spec(b_rm.shape),
        ],
        out_specs=pl.BlockSpec((1, 1, t_block), lambda b, t: (b, 0, t)),
        scratch_shapes=[
            pltpu.VMEM((L, C, d_carry), jnp.float32),
        ],
        compiler_params=pltpu.CompilerParams(**cp_kwargs),
    )(x, params["w_in"], params["b_in"], w_hid_cat, b_hid, w_rm, b_rm)


def init_params(key, num_channels, dilation_depth, num_repeat, kernel_size=2):
    """Deterministic synthetic parameters matching WaveNet.__init__ shapes."""
    assert kernel_size == 2
    C = num_channels
    dilations = tuple(2 ** d for d in range(dilation_depth)) * num_repeat
    L = len(dilations)
    ks = jax.random.split(key, 8)
    s = 0.3
    w_hid = jax.random.normal(ks[2], (L, 2 * C, C, kernel_size), jnp.float32) * s
    params = dict(
        w_in=jax.random.normal(ks[0], (C, 1), jnp.float32) * s,
        b_in=jax.random.normal(ks[1], (C, 1), jnp.float32) * s,
        w_hid0=w_hid[..., 0],            # tap at t - d
        w_hid1=w_hid[..., 1],            # tap at t
        b_hid=jax.random.normal(ks[3], (L, 2 * C, 1), jnp.float32) * s,
        w_res=jax.random.normal(ks[4], (L, C, C), jnp.float32) * s,
        b_res=jax.random.normal(ks[5], (L, C, 1), jnp.float32) * s,
        w_mix=jax.random.normal(ks[6], (1, C * L), jnp.float32) * s,
        b_mix=jax.random.normal(ks[7], (1, 1), jnp.float32) * s,
    )
    return params, dilations


def wavenet_ref(x, params, dilations):
    """Pure-JAX reference of the PyTorch forward (NCW layout)."""
    C = params["w_in"].shape[0]
    T = x.shape[-1]
    h = params["w_in"][None] * x + params["b_in"][None]          # (B, C, T)
    skips = []
    for l, d in enumerate(dilations):
        xl = h
        xs = jnp.pad(xl, ((0, 0), (0, 0), (d, 0)))[:, :, :T]
        pre = (jnp.einsum("oc,bct->bot", params["w_hid0"][l], xs)
               + jnp.einsum("oc,bct->bot", params["w_hid1"][l], xl)
               + params["b_hid"][l][None])
        gate = jnp.tanh(pre[:, :C]) * jax.nn.sigmoid(pre[:, C:])
        skips.append(gate)
        h = (jnp.einsum("oc,bct->bot", params["w_res"][l], gate)
             + params["b_res"][l][None] + xl)
    sk = jnp.concatenate(skips, axis=1)
    return jnp.einsum("oc,bct->bot", params["w_mix"], sk) + params["b_mix"][None]


if __name__ == "__main__":
    num_channels = 4
    dilation_depth = 3
    num_repeat = 2
    B, T = 2, 512            # small, lane-dense; multiple time blocks per sequence

    key = jax.random.PRNGKey(0)
    k_x, k_p = jax.random.split(key)
    params, dilations = init_params(k_p, num_channels, dilation_depth, num_repeat)
    x = jax.random.normal(k_x, (B, 1, T), jnp.float32)   # (batch, 1 channel, time)

    ref = wavenet_ref(x, params, dilations)

    # 1) f32, T_blk=256: cross-block carry + carry-narrower-than-block path.
    out = jax.block_until_ready(wavenet_pallas(x, params, dilations, t_block=256))
    assert out.shape == (B, 1, T), out.shape
    err = float(jnp.max(jnp.abs(out - ref)))
    assert jnp.allclose(out, ref, atol=3e-5, rtol=1e-4), err

    # 2) f32, T_blk=128: carry width == block width path.
    out2 = jax.block_until_ready(wavenet_pallas(x, params, dilations, t_block=128))
    err2 = float(jnp.max(jnp.abs(out2 - ref)))
    assert jnp.allclose(out2, ref, atol=3e-5, rtol=1e-4), err2

    # 3) bf16 MXU operands + bf16 tanh (v6e/v7x-style); looser tolerance.
    out3 = jax.block_until_ready(
        wavenet_pallas(x, params, dilations, t_block=256,
                       compute_dtype=jnp.bfloat16))
    assert bool(jnp.all(jnp.isfinite(out3)))
    err3 = float(jnp.max(jnp.abs(out3 - ref)))
    assert jnp.allclose(out3, ref, atol=2.5e-1, rtol=5e-2), err3

    print("KERNEL_OK")
</pallas_src>

<mosaic_0001>
module attributes {stable_mosaic.version = 11 : i64} {
  func.func @_wavenet_kernel(%arg0: i32, %arg1: i32, %arg2: memref<1x1x256xf32, #tpu.memory_space<vmem>>, %arg3: memref<4x1xf32, #tpu.memory_space<vmem>>, %arg4: memref<4x1xf32, #tpu.memory_space<vmem>>, %arg5: memref<6x8x8xf32, #tpu.memory_space<vmem>>, %arg6: memref<6x8x1xf32, #tpu.memory_space<vmem>>, %arg7: memref<6x5x4xf32, #tpu.memory_space<vmem>>, %arg8: memref<6x5x1xf32, #tpu.memory_space<vmem>>, %arg9: memref<1x1x256xf32, #tpu.memory_space<vmem>>, %arg10: memref<6x4x128xf32, #tpu.memory_space<vmem>>) attributes {dimension_semantics = [#tpu.dimension_semantics<parallel>, #tpu.dimension_semantics<arbitrary>], iteration_bounds = array<i64: 2, 2>, scalar_prefetch = 0 : i64, scratch_operands = 1 : i64, tpu.core_type = #tpu.core_type<tc>, window_params = [{transform_indices = @transform_0, window_bounds = array<i64: 1, 1, 256>}, {pipeline_mode = #tpu.pipeline_mode<synchronous>, transform_indices = @transform_1, window_bounds = array<i64: 4, 1>}, {pipeline_mode = #tpu.pipeline_mode<synchronous>, transform_indices = @transform_2, window_bounds = array<i64: 4, 1>}, {pipeline_mode = #tpu.pipeline_mode<synchronous>, transform_indices = @transform_3, window_bounds = array<i64: 6, 8, 8>}, {pipeline_mode = #tpu.pipeline_mode<synchronous>, transform_indices = @transform_4, window_bounds = array<i64: 6, 8, 1>}, {pipeline_mode = #tpu.pipeline_mode<synchronous>, transform_indices = @transform_5, window_bounds = array<i64: 6, 5, 4>}, {pipeline_mode = #tpu.pipeline_mode<synchronous>, transform_indices = @transform_6, window_bounds = array<i64: 6, 5, 1>}, {transform_indices = @transform_7, window_bounds = array<i64: 1, 1, 256>}]} {
    %c0_i32 = arith.constant 0 : i32
    %0 = arith.cmpi eq, %arg1, %c0_i32 : i32
    %1 = arith.extui %0 : i1 to i32
    %c0_i32_0 = arith.constant 0 : i32
    %2 = arith.cmpi ne, %1, %c0_i32_0 : i32
    scf.if %2 {
      %cst_152 = arith.constant 0.000000e+00 : f32
      %261 = vector.broadcast %cst_152 : f32 to vector<6x4x128xf32>
      %c0_153 = arith.constant 0 : index
      %c0_154 = arith.constant 0 : index
      %c0_155 = arith.constant 0 : index
      %262 = vector.load %arg10[%c0_153, %c0_154, %c0_155] : memref<6x4x128xf32, #tpu.memory_space<vmem>>, vector<6x4x128xf32>
      tpu.vector_store %arg10[%c0_153, %c0_154, %c0_155], %261 {strides = array<i32>} : memref<6x4x128xf32, #tpu.memory_space<vmem>>, vector<6x4x128xf32>,
    } else {
    }
    %c0 = arith.constant 0 : index
    %c0_1 = arith.constant 0 : index
    %c0_2 = arith.constant 0 : index
    %3 = vector.load %arg2[%c0, %c0_1, %c0_2] : memref<1x1x256xf32, #tpu.memory_space<vmem>>, vector<1x1x256xf32>
    %4 = vector.shape_cast %3 : vector<1x1x256xf32> to vector<1x256xf32>
    %c0_3 = arith.constant 0 : index
    %c0_4 = arith.constant 0 : index
    %5 = vector.load %arg3[%c0_3, %c0_4] : memref<4x1xf32, #tpu.memory_space<vmem>>, vector<4x1xf32>
    %c0_5 = arith.constant 0 : index
    %c0_6 = arith.constant 0 : index
    %6 = vector.load %arg4[%c0_5, %c0_6] : memref<4x1xf32, #tpu.memory_space<vmem>>, vector<4x1xf32>
    %7 = vector.broadcast %5 : vector<4x1xf32> to vector<4x256xf32>
    %8 = vector.broadcast %4 : vector<1x256xf32> to vector<4x256xf32>
    %9 = arith.mulf %7, %8 : vector<4x256xf32>
    %10 = vector.broadcast %6 : vector<4x1xf32> to vector<4x256xf32>
    %11 = arith.addf %9, %10 : vector<4x256xf32>
    %12 = tpu.iota {dimensions = array<i32: 1>} : vector<4x128xi32>
    %cst = arith.constant 0.000000e+00 : f32
    %13 = vector.broadcast %cst : f32 to vector<1x256xf32>
    %c0_7 = arith.constant 0 : index
    %c0_8 = arith.constant 0 : index
    %c0_9 = arith.constant 0 : index
    %14 = vector.load %arg10[%c0_7, %c0_8, %c0_9] : memref<6x4x128xf32, #tpu.memory_space<vmem>>, vector<1x4x128xf32>
    %15 = vector.shape_cast %14 : vector<1x4x128xf32> to vector<4x128xf32>
    %16 = vector.extract_strided_slice %11 {offsets = [0, 128], sizes = [4, 128], strides = [1, 1]} : vector<4x256xf32> to vector<4x128xf32>
    %c0_10 = arith.constant 0 : index
    %c0_11 = arith.constant 0 : index
    %c0_12 = arith.constant 0 : index
    %17 = vector.load %arg10[%c0_10, %c0_11, %c0_12] : memref<6x4x128xf32, #tpu.memory_space<vmem>>, vector<1x4x128xf32>
    %18 = vector.shape_cast %17 : vector<1x4x128xf32> to vector<4x128xf32>
    %19 = vector.shape_cast %16 : vector<4x128xf32> to vector<1x4x128xf32>
    tpu.vector_store %arg10[%c0_10, %c0_11, %c0_12], %19 {strides = array<i32>} : memref<6x4x128xf32, #tpu.memory_space<vmem>>, vector<1x4x128xf32>,
    %c1_i32 = arith.constant 1 : i32
    %20 = tpu.dynamic_rotate %11 by %c1_i32 dim 1 : vector<4x256xf32>, i32 -> vector<4x256xf32>
    %c1_i32_13 = arith.constant 1 : i32
    %21 = tpu.dynamic_rotate %15 by %c1_i32_13 dim 1 : vector<4x128xf32>, i32 -> vector<4x128xf32>
    %c1_i32_14 = arith.constant 1 : i32
    %22 = vector.broadcast %c1_i32_14 : i32 to vector<4x128xi32>
    %23 = arith.cmpi slt, %12, %22 : vector<4x128xi32>
    %24 = vector.extract_strided_slice %20 {offsets = [0, 0], sizes = [4, 128], strides = [1, 1]} : vector<4x256xf32> to vector<4x128xf32>
    %25 = arith.select %23, %21, %24 : vector<4x128xi1>, vector<4x128xf32>
    %26 = vector.extract_strided_slice %20 {offsets = [0, 128], sizes = [4, 128], strides = [1, 1]} : vector<4x256xf32> to vector<4x128xf32>
    %27 = tpu.concatenate %25, %26 in 1 : vector<4x128xf32>, vector<4x128xf32> -> vector<4x256xf32>
    %28 = tpu.concatenate %27, %11 in 0 : vector<4x256xf32>, vector<4x256xf32> -> vector<8x256xf32>
    %c0_15 = arith.constant 0 : index
    %c0_16 = arith.constant 0 : index
    %c0_17 = arith.constant 0 : index
    %29 = vector.load %arg5[%c0_15, %c0_16, %c0_17] : memref<6x8x8xf32, #tpu.memory_space<vmem>>, vector<1x8x8xf32>
    %30 = vector.shape_cast %29 : vector<1x8x8xf32> to vector<8x8xf32>
    %cst_18 = arith.constant dense<0.000000e+00> : vector<8x256xf32>
    %31 = tpu.matmul %30, %28, %cst_18 {dimension_numbers = #tpu.dot_dimension_numbers<[1], [0], [0], [1], [0, 0, 1, 1], [], []>} : vector<8x8xf32>, vector<8x256xf32>, vector<8x256xf32> -> vector<8x256xf32>
    %c0_19 = arith.constant 0 : index
    %c0_20 = arith.constant 0 : index
    %c0_21 = arith.constant 0 : index
    %32 = vector.load %arg6[%c0_19, %c0_20, %c0_21] : memref<6x8x1xf32, #tpu.memory_space<vmem>>, vector<1x8x1xf32>
    %33 = vector.shape_cast %32 : vector<1x8x1xf32> to vector<8x1xf32>
    %34 = vector.broadcast %33 : vector<8x1xf32> to vector<8x256xf32>
    %35 = arith.addf %31, %34 : vector<8x256xf32>
    %36 = math.tanh %35 : vector<8x256xf32>
    %37 = vector.extract_strided_slice %36 {offsets = [0, 0], sizes = [4, 256], strides = [1, 1]} : vector<8x256xf32> to vector<4x256xf32>
    %38 = vector.extract_strided_slice %36 {offsets = [4, 0], sizes = [4, 256], strides = [1, 1]} : vector<8x256xf32> to vector<4x256xf32>
    %cst_22 = arith.constant 5.000000e-01 : f32
    %39 = vector.broadcast %cst_22 : f32 to vector<4x256xf32>
    %40 = arith.mulf %39, %38 : vector<4x256xf32>
    %cst_23 = arith.constant 5.000000e-01 : f32
    %41 = vector.broadcast %cst_23 : f32 to vector<4x256xf32>
    %42 = arith.addf %41, %40 : vector<4x256xf32>
    %43 = arith.mulf %37, %42 : vector<4x256xf32>
    %c0_24 = arith.constant 0 : index
    %c0_25 = arith.constant 0 : index
    %c0_26 = arith.constant 0 : index
    %44 = vector.load %arg7[%c0_24, %c0_25, %c0_26] : memref<6x5x4xf32, #tpu.memory_space<vmem>>, vector<1x5x4xf32>
    %45 = vector.shape_cast %44 : vector<1x5x4xf32> to vector<5x4xf32>
    %cst_27 = arith.constant dense<0.000000e+00> : vector<5x256xf32>
    %46 = tpu.matmul %45, %43, %cst_27 {dimension_numbers = #tpu.dot_dimension_numbers<[1], [0], [0], [1], [0, 0, 1, 1], [], []>} : vector<5x4xf32>, vector<4x256xf32>, vector<5x256xf32> -> vector<5x256xf32>
    %c0_28 = arith.constant 0 : index
    %c0_29 = arith.constant 0 : index
    %c0_30 = arith.constant 0 : index
    %47 = vector.load %arg8[%c0_28, %c0_29, %c0_30] : memref<6x5x1xf32, #tpu.memory_space<vmem>>, vector<1x5x1xf32>
    %48 = vector.shape_cast %47 : vector<1x5x1xf32> to vector<5x1xf32>
    %49 = vector.broadcast %48 : vector<5x1xf32> to vector<5x256xf32>
    %50 = arith.addf %46, %49 : vector<5x256xf32>
    %51 = vector.extract_strided_slice %50 {offsets = [0, 0], sizes = [4, 256], strides = [1, 1]} : vector<5x256xf32> to vector<4x256xf32>
    %52 = arith.addf %51, %11 : vector<4x256xf32>
    %53 = vector.extract_strided_slice %50 {offsets = [4, 0], sizes = [1, 256], strides = [1, 1]} : vector<5x256xf32> to vector<1x256xf32>
    %54 = arith.addf %13, %53 : vector<1x256xf32>
    %c1 = arith.constant 1 : index
    %c0_31 = arith.constant 0 : index
    %c0_32 = arith.constant 0 : index
    %55 = vector.load %arg10[%c1, %c0_31, %c0_32] : memref<6x4x128xf32, #tpu.memory_space<vmem>>, vector<1x4x128xf32>
    %56 = vector.shape_cast %55 : vector<1x4x128xf32> to vector<4x128xf32>
    %57 = vector.extract_strided_slice %52 {offsets = [0, 128], sizes = [4, 128], strides = [1, 1]} : vector<4x256xf32> to vector<4x128xf32>
    %c1_33 = arith.constant 1 : index
    %c0_34 = arith.constant 0 : index
    %c0_35 = arith.constant 0 : index
    %58 = vector.load %arg10[%c1_33, %c0_34, %c0_35] : memref<6x4x128xf32, #tpu.memory_space<vmem>>, vector<1x4x128xf32>
    %59 = vector.shape_cast %58 : vector<1x4x128xf32> to vector<4x128xf32>
    %60 = vector.shape_cast %57 : vector<4x128xf32> to vector<1x4x128xf32>
    tpu.vector_store %arg10[%c1_33, %c0_34, %c0_35], %60 {strides = array<i32>} : memref<6x4x128xf32, #tpu.memory_space<vmem>>, vector<1x4x128xf32>,
    %c2_i32 = arith.constant 2 : i32
    %61 = tpu.dynamic_rotate %52 by %c2_i32 dim 1 : vector<4x256xf32>, i32 -> vector<4x256xf32>
    %c2_i32_36 = arith.constant 2 : i32
    %62 = tpu.dynamic_rotate %56 by %c2_i32_36 dim 1 : vector<4x128xf32>, i32 -> vector<4x128xf32>
    %c2_i32_37 = arith.constant 2 : i32
    %63 = vector.broadcast %c2_i32_37 : i32 to vector<4x128xi32>
    %64 = arith.cmpi slt, %12, %63 : vector<4x128xi32>
    %65 = vector.extract_strided_slice %61 {offsets = [0, 0], sizes = [4, 128], strides = [1, 1]} : vector<4x256xf32> to vector<4x128xf32>
    %66 = arith.select %64, %62, %65 : vector<4x128xi1>, vector<4x128xf32>
    %67 = vector.extract_strided_slice %61 {offsets = [0, 128], sizes = [4, 128], strides = [1, 1]} : vector<4x256xf32> to vector<4x128xf32>
    %68 = tpu.concatenate %66, %67 in 1 : vector<4x128xf32>, vector<4x128xf32> -> vector<4x256xf32>
    %69 = tpu.concatenate %68, %52 in 0 : vector<4x256xf32>, vector<4x256xf32> -> vector<8x256xf32>
    %c1_38 = arith.constant 1 : index
    %c0_39 = arith.constant 0 : index
    %c0_40 = arith.constant 0 : index
    %70 = vector.load %arg5[%c1_38, %c0_39, %c0_40] : memref<6x8x8xf32, #tpu.memory_space<vmem>>, vector<1x8x8xf32>
    %71 = vector.shape_cast %70 : vector<1x8x8xf32> to vector<8x8xf32>
    %cst_41 = arith.constant dense<0.000000e+00> : vector<8x256xf32>
    %72 = tpu.matmul %71, %69, %cst_41 {dimension_numbers = #tpu.dot_dimension_numbers<[1], [0], [0], [1], [0, 0, 1, 1], [], []>} : vector<8x8xf32>, vector<8x256xf32>, vector<8x256xf32> -> vector<8x256xf32>
    %c1_42 = arith.constant 1 : index
    %c0_43 = arith.constant 0 : index
    %c0_44 = arith.constant 0 : index
    %73 = vector.load %arg6[%c1_42, %c0_43, %c0_44] : memref<6x8x1xf32, #tpu.memory_space<vmem>>, vector<1x8x1xf32>
    %74 = vector.shape_cast %73 : vector<1x8x1xf32> to vector<8x1xf32>
    %75 = vector.broadcast %74 : vector<8x1xf32> to vector<8x256xf32>
    %76 = arith.addf %72, %75 : vector<8x256xf32>
    %77 = math.tanh %76 : vector<8x256xf32>
    %78 = vector.extract_strided_slice %77 {offsets = [0, 0], sizes = [4, 256], strides = [1, 1]} : vector<8x256xf32> to vector<4x256xf32>
    %79 = vector.extract_strided_slice %77 {offsets = [4, 0], sizes = [4, 256], strides = [1, 1]} : vector<8x256xf32> to vector<4x256xf32>
    %cst_45 = arith.constant 5.000000e-01 : f32
    %80 = vector.broadcast %cst_45 : f32 to vector<4x256xf32>
    %81 = arith.mulf %80, %79 : vector<4x256xf32>
    %cst_46 = arith.constant 5.000000e-01 : f32
    %82 = vector.broadcast %cst_46 : f32 to vector<4x256xf32>
    %83 = arith.addf %82, %81 : vector<4x256xf32>
    %84 = arith.mulf %78, %83 : vector<4x256xf32>
    %c1_47 = arith.constant 1 : index
    %c0_48 = arith.constant 0 : index
    %c0_49 = arith.constant 0 : index
    %85 = vector.load %arg7[%c1_47, %c0_48, %c0_49] : memref<6x5x4xf32, #tpu.memory_space<vmem>>, vector<1x5x4xf32>
    %86 = vector.shape_cast %85 : vector<1x5x4xf32> to vector<5x4xf32>
    %cst_50 = arith.constant dense<0.000000e+00> : vector<5x256xf32>
    %87 = tpu.matmul %86, %84, %cst_50 {dimension_numbers = #tpu.dot_dimension_numbers<[1], [0], [0], [1], [0, 0, 1, 1], [], []>} : vector<5x4xf32>, vector<4x256xf32>, vector<5x256xf32> -> vector<5x256xf32>
    %c1_51 = arith.constant 1 : index
    %c0_52 = arith.constant 0 : index
    %c0_53 = arith.constant 0 : index
    %88 = vector.load %arg8[%c1_51, %c0_52, %c0_53] : memref<6x5x1xf32, #tpu.memory_space<vmem>>, vector<1x5x1xf32>
    %89 = vector.shape_cast %88 : vector<1x5x1xf32> to vector<5x1xf32>
    %90 = vector.broadcast %89 : vector<5x1xf32> to vector<5x256xf32>
    %91 = arith.addf %87, %90 : vector<5x256xf32>
    %92 = vector.extract_strided_slice %91 {offsets = [0, 0], sizes = [4, 256], strides = [1, 1]} : vector<5x256xf32> to vector<4x256xf32>
    %93 = arith.addf %92, %52 : vector<4x256xf32>
    %94 = vector.extract_strided_slice %91 {offsets = [4, 0], sizes = [1, 256], strides = [1, 1]} : vector<5x256xf32> to vector<1x256xf32>
    %95 = arith.addf %54, %94 : vector<1x256xf32>
    %c2 = arith.constant 2 : index
    %c0_54 = arith.constant 0 : index
    %c0_55 = arith.constant 0 : index
    %96 = vector.load %arg10[%c2, %c0_54, %c0_55] : memref<6x4x128xf32, #tpu.memory_space<vmem>>, vector<1x4x128xf32>
    %97 = vector.shape_cast %96 : vector<1x4x128xf32> to vector<4x128xf32>
    %98 = vector.extract_strided_slice %93 {offsets = [0, 128], sizes = [4, 128], strides = [1, 1]} : vector<4x256xf32> to vector<4x128xf32>
    %c2_56 = arith.constant 2 : index
    %c0_57 = arith.constant 0 : index
    %c0_58 = arith.constant 0 : index
    %99 = vector.load %arg10[%c2_56, %c0_57, %c0_58] : memref<6x4x128xf32, #tpu.memory_space<vmem>>, vector<1x4x128xf32>
    %100 = vector.shape_cast %99 : vector<1x4x128xf32> to vector<4x128xf32>
    %101 = vector.shape_cast %98 : vector<4x128xf32> to vector<1x4x128xf32>
    tpu.vector_store %arg10[%c2_56, %c0_57, %c0_58], %101 {strides = array<i32>} : memref<6x4x128xf32, #tpu.memory_space<vmem>>, vector<1x4x128xf32>,
    %c4_i32 = arith.constant 4 : i32
    %102 = tpu.dynamic_rotate %93 by %c4_i32 dim 1 : vector<4x256xf32>, i32 -> vector<4x256xf32>
    %c4_i32_59 = arith.constant 4 : i32
    %103 = tpu.dynamic_rotate %97 by %c4_i32_59 dim 1 : vector<4x128xf32>, i32 -> vector<4x128xf32>
    %c4_i32_60 = arith.constant 4 : i32
    %104 = vector.broadcast %c4_i32_60 : i32 to vector<4x128xi32>
    %105 = arith.cmpi slt, %12, %104 : vector<4x128xi32>
    %106 = vector.extract_strided_slice %102 {offsets = [0, 0], sizes = [4, 128], strides = [1, 1]} : vector<4x256xf32> to vector<4x128xf32>
    %107 = arith.select %105, %103, %106 : vector<4x128xi1>, vector<4x128xf32>
    %108 = vector.extract_strided_slice %102 {offsets = [0, 128], sizes = [4, 128], strides = [1, 1]} : vector<4x256xf32> to vector<4x128xf32>
    %109 = tpu.concatenate %107, %108 in 1 : vector<4x128xf32>, vector<4x128xf32> -> vector<4x256xf32>
    %110 = tpu.concatenate %109, %93 in 0 : vector<4x256xf32>, vector<4x256xf32> -> vector<8x256xf32>
    %c2_61 = arith.constant 2 : index
    %c0_62 = arith.constant 0 : index
    %c0_63 = arith.constant 0 : index
    %111 = vector.load %arg5[%c2_61, %c0_62, %c0_63] : memref<6x8x8xf32, #tpu.memory_space<vmem>>, vector<1x8x8xf32>
    %112 = vector.shape_cast %111 : vector<1x8x8xf32> to vector<8x8xf32>
    %cst_64 = arith.constant dense<0.000000e+00> : vector<8x256xf32>
    %113 = tpu.matmul %112, %110, %cst_64 {dimension_numbers = #tpu.dot_dimension_numbers<[1], [0], [0], [1], [0, 0, 1, 1], [], []>} : vector<8x8xf32>, vector<8x256xf32>, vector<8x256xf32> -> vector<8x256xf32>
    %c2_65 = arith.constant 2 : index
    %c0_66 = arith.constant 0 : index
    %c0_67 = arith.constant 0 : index
    %114 = vector.load %arg6[%c2_65, %c0_66, %c0_67] : memref<6x8x1xf32, #tpu.memory_space<vmem>>, vector<1x8x1xf32>
    %115 = vector.shape_cast %114 : vector<1x8x1xf32> to vector<8x1xf32>
    %116 = vector.broadcast %115 : vector<8x1xf32> to vector<8x256xf32>
    %117 = arith.addf %113, %116 : vector<8x256xf32>
    %118 = math.tanh %117 : vector<8x256xf32>
    %119 = vector.extract_strided_slice %118 {offsets = [0, 0], sizes = [4, 256], strides = [1, 1]} : vector<8x256xf32> to vector<4x256xf32>
    %120 = vector.extract_strided_slice %118 {offsets = [4, 0], sizes = [4, 256], strides = [1, 1]} : vector<8x256xf32> to vector<4x256xf32>
    %cst_68 = arith.constant 5.000000e-01 : f32
    %121 = vector.broadcast %cst_68 : f32 to vector<4x256xf32>
    %122 = arith.mulf %121, %120 : vector<4x256xf32>
    %cst_69 = arith.constant 5.000000e-01 : f32
    %123 = vector.broadcast %cst_69 : f32 to vector<4x256xf32>
    %124 = arith.addf %123, %122 : vector<4x256xf32>
    %125 = arith.mulf %119, %124 : vector<4x256xf32>
    %c2_70 = arith.constant 2 : index
    %c0_71 = arith.constant 0 : index
    %c0_72 = arith.constant 0 : index
    %126 = vector.load %arg7[%c2_70, %c0_71, %c0_72] : memref<6x5x4xf32, #tpu.memory_space<vmem>>, vector<1x5x4xf32>
    %127 = vector.shape_cast %126 : vector<1x5x4xf32> to vector<5x4xf32>
    %cst_73 = arith.constant dense<0.000000e+00> : vector<5x256xf32>
    %128 = tpu.matmul %127, %125, %cst_73 {dimension_numbers = #tpu.dot_dimension_numbers<[1], [0], [0], [1], [0, 0, 1, 1], [], []>} : vector<5x4xf32>, vector<4x256xf32>, vector<5x256xf32> -> vector<5x256xf32>
    %c2_74 = arith.constant 2 : index
    %c0_75 = arith.constant 0 : index
    %c0_76 = arith.constant 0 : index
    %129 = vector.load %arg8[%c2_74, %c0_75, %c0_76] : memref<6x5x1xf32, #tpu.memory_space<vmem>>, vector<1x5x1xf32>
    %130 = vector.shape_cast %129 : vector<1x5x1xf32> to vector<5x1xf32>
    %131 = vector.broadcast %130 : vector<5x1xf32> to vector<5x256xf32>
    %132 = arith.addf %128, %131 : vector<5x256xf32>
    %133 = vector.extract_strided_slice %132 {offsets = [0, 0], sizes = [4, 256], strides = [1, 1]} : vector<5x256xf32> to vector<4x256xf32>
    %134 = arith.addf %133, %93 : vector<4x256xf32>
    %135 = vector.extract_strided_slice %132 {offsets = [4, 0], sizes = [1, 256], strides = [1, 1]} : vector<5x256xf32> to vector<1x256xf32>
    %136 = arith.addf %95, %135 : vector<1x256xf32>
    %c3 = arith.constant 3 : index
    %c0_77 = arith.constant 0 : index
    %c0_78 = arith.constant 0 : index
    %137 = vector.load %arg10[%c3, %c0_77, %c0_78] : memref<6x4x128xf32, #tpu.memory_space<vmem>>, vector<1x4x128xf32>
    %138 = vector.shape_cast %137 : vector<1x4x128xf32> to vector<4x128xf32>
    %139 = vector.extract_strided_slice %134 {offsets = [0, 128], sizes = [4, 128], strides = [1, 1]} : vector<4x256xf32> to vector<4x128xf32>
    %c3_79 = arith.constant 3 : index
    %c0_80 = arith.constant 0 : index
    %c0_81 = arith.constant 0 : index
    %140 = vector.load %arg10[%c3_79, %c0_80, %c0_81] : memref<6x4x128xf32, #tpu.memory_space<vmem>>, vector<1x4x128xf32>
    %141 = vector.shape_cast %140 : vector<1x4x128xf32> to vector<4x128xf32>
    %142 = vector.shape_cast %139 : vector<4x128xf32> to vector<1x4x128xf32>
    tpu.vector_store %arg10[%c3_79, %c0_80, %c0_81], %142 {strides = array<i32>} : memref<6x4x128xf32, #tpu.memory_space<vmem>>, vector<1x4x128xf32>,
    %c1_i32_82 = arith.constant 1 : i32
    %143 = tpu.dynamic_rotate %134 by %c1_i32_82 dim 1 : vector<4x256xf32>, i32 -> vector<4x256xf32>
    %c1_i32_83 = arith.constant 1 : i32
    %144 = tpu.dynamic_rotate %138 by %c1_i32_83 dim 1 : vector<4x128xf32>, i32 -> vector<4x128xf32>
    %c1_i32_84 = arith.constant 1 : i32
    %145 = vector.broadcast %c1_i32_84 : i32 to vector<4x128xi32>
    %146 = arith.cmpi slt, %12, %145 : vector<4x128xi32>
    %147 = vector.extract_strided_slice %143 {offsets = [0, 0], sizes = [4, 128], strides = [1, 1]} : vector<4x256xf32> to vector<4x128xf32>
    %148 = arith.select %146, %144, %147 : vector<4x128xi1>, vector<4x128xf32>
    %149 = vector.extract_strided_slice %143 {offsets = [0, 128], sizes = [4, 128], strides = [1, 1]} : vector<4x256xf32> to vector<4x128xf32>
    %150 = tpu.concatenate %148, %149 in 1 : vector<4x128xf32>, vector<4x128xf32> -> vector<4x256xf32>
    %151 = tpu.concatenate %150, %134 in 0 : vector<4x256xf32>, vector<4x256xf32> -> vector<8x256xf32>
    %c3_85 = arith.constant 3 : index
    %c0_86 = arith.constant 0 : index
    %c0_87 = arith.constant 0 : index
    %152 = vector.load %arg5[%c3_85, %c0_86, %c0_87] : memref<6x8x8xf32, #tpu.memory_space<vmem>>, vector<1x8x8xf32>
    %153 = vector.shape_cast %152 : vector<1x8x8xf32> to vector<8x8xf32>
    %cst_88 = arith.constant dense<0.000000e+00> : vector<8x256xf32>
    %154 = tpu.matmul %153, %151, %cst_88 {dimension_numbers = #tpu.dot_dimension_numbers<[1], [0], [0], [1], [0, 0, 1, 1], [], []>} : vector<8x8xf32>, vector<8x256xf32>, vector<8x256xf32> -> vector<8x256xf32>
    %c3_89 = arith.constant 3 : index
    %c0_90 = arith.constant 0 : index
    %c0_91 = arith.constant 0 : index
    %155 = vector.load %arg6[%c3_89, %c0_90, %c0_91] : memref<6x8x1xf32, #tpu.memory_space<vmem>>, vector<1x8x1xf32>
    %156 = vector.shape_cast %155 : vector<1x8x1xf32> to vector<8x1xf32>
    %157 = vector.broadcast %156 : vector<8x1xf32> to vector<8x256xf32>
    %158 = arith.addf %154, %157 : vector<8x256xf32>
    %159 = math.tanh %158 : vector<8x256xf32>
    %160 = vector.extract_strided_slice %159 {offsets = [0, 0], sizes = [4, 256], strides = [1, 1]} : vector<8x256xf32> to vector<4x256xf32>
    %161 = vector.extract_strided_slice %159 {offsets = [4, 0], sizes = [4, 256], strides = [1, 1]} : vector<8x256xf32> to vector<4x256xf32>
    %cst_92 = arith.constant 5.000000e-01 : f32
    %162 = vector.broadcast %cst_92 : f32 to vector<4x256xf32>
    %163 = arith.mulf %162, %161 : vector<4x256xf32>
    %cst_93 = arith.constant 5.000000e-01 : f32
    %164 = vector.broadcast %cst_93 : f32 to vector<4x256xf32>
    %165 = arith.addf %164, %163 : vector<4x256xf32>
    %166 = arith.mulf %160, %165 : vector<4x256xf32>
    %c3_94 = arith.constant 3 : index
    %c0_95 = arith.constant 0 : index
    %c0_96 = arith.constant 0 : index
    %167 = vector.load %arg7[%c3_94, %c0_95, %c0_96] : memref<6x5x4xf32, #tpu.memory_space<vmem>>, vector<1x5x4xf32>
    %168 = vector.shape_cast %167 : vector<1x5x4xf32> to vector<5x4xf32>
    %cst_97 = arith.constant dense<0.000000e+00> : vector<5x256xf32>
    %169 = tpu.matmul %168, %166, %cst_97 {dimension_numbers = #tpu.dot_dimension_numbers<[1], [0], [0], [1], [0, 0, 1, 1], [], []>} : vector<5x4xf32>, vector<4x256xf32>, vector<5x256xf32> -> vector<5x256xf32>
    %c3_98 = arith.constant 3 : index
    %c0_99 = arith.constant 0 : index
    %c0_100 = arith.constant 0 : index
    %170 = vector.load %arg8[%c3_98, %c0_99, %c0_100] : memref<6x5x1xf32, #tpu.memory_space<vmem>>, vector<1x5x1xf32>
    %171 = vector.shape_cast %170 : vector<1x5x1xf32> to vector<5x1xf32>
    %172 = vector.broadcast %171 : vector<5x1xf32> to vector<5x256xf32>
    %173 = arith.addf %169, %172 : vector<5x256xf32>
    %174 = vector.extract_strided_slice %173 {offsets = [0, 0], sizes = [4, 256], strides = [1, 1]} : vector<5x256xf32> to vector<4x256xf32>
    %175 = arith.addf %174, %134 : vector<4x256xf32>
    %176 = vector.extract_strided_slice %173 {offsets = [4, 0], sizes = [1, 256], strides = [1, 1]} : vector<5x256xf32> to vector<1x256xf32>
    %177 = arith.addf %136, %176 : vector<1x256xf32>
    %c4 = arith.constant 4 : index
    %c0_101 = arith.constant 0 : index
    %c0_102 = arith.constant 0 : index
    %178 = vector.load %arg10[%c4, %c0_101, %c0_102] : memref<6x4x128xf32, #tpu.memory_space<vmem>>, vector<1x4x128xf32>
    %179 = vector.shape_cast %178 : vector<1x4x128xf32> to vector<4x128xf32>
    %180 = vector.extract_strided_slice %175 {offsets = [0, 128], sizes = [4, 128], strides = [1, 1]} : vector<4x256xf32> to vector<4x128xf32>
    %c4_103 = arith.constant 4 : index
    %c0_104 = arith.constant 0 : index
    %c0_105 = arith.constant 0 : index
    %181 = vector.load %arg10[%c4_103, %c0_104, %c0_105] : memref<6x4x128xf32, #tpu.memory_space<vmem>>, vector<1x4x128xf32>
    %182 = vector.shape_cast %181 : vector<1x4x128xf32> to vector<4x128xf32>
    %183 = vector.shape_cast %180 : vector<4x128xf32> to vector<1x4x128xf32>
    tpu.vector_store %arg10[%c4_103, %c0_104, %c0_105], %183 {strides = array<i32>} : memref<6x4x128xf32, #tpu.memory_space<vmem>>, vector<1x4x128xf32>,
    %c2_i32_106 = arith.constant 2 : i32
    %184 = tpu.dynamic_rotate %175 by %c2_i32_106 dim 1 : vector<4x256xf32>, i32 -> vector<4x256xf32>
    %c2_i32_107 = arith.constant 2 : i32
    %185 = tpu.dynamic_rotate %179 by %c2_i32_107 dim 1 : vector<4x128xf32>, i32 -> vector<4x128xf32>
    %c2_i32_108 = arith.constant 2 : i32
    %186 = vector.broadcast %c2_i32_108 : i32 to vector<4x128xi32>
    %187 = arith.cmpi slt, %12, %186 : vector<4x128xi32>
    %188 = vector.extract_strided_slice %184 {offsets = [0, 0], sizes = [4, 128], strides = [1, 1]} : vector<4x256xf32> to vector<4x128xf32>
    %189 = arith.select %187, %185, %188 : vector<4x128xi1>, vector<4x128xf32>
    %190 = vector.extract_strided_slice %184 {offsets = [0, 128], sizes = [4, 128], strides = [1, 1]} : vector<4x256xf32> to vector<4x128xf32>
    %191 = tpu.concatenate %189, %190 in 1 : vector<4x128xf32>, vector<4x128xf32> -> vector<4x256xf32>
    %192 = tpu.concatenate %191, %175 in 0 : vector<4x256xf32>, vector<4x256xf32> -> vector<8x256xf32>
    %c4_109 = arith.constant 4 : index
    %c0_110 = arith.constant 0 : index
    %c0_111 = arith.constant 0 : index
    %193 = vector.load %arg5[%c4_109, %c0_110, %c0_111] : memref<6x8x8xf32, #tpu.memory_space<vmem>>, vector<1x8x8xf32>
    %194 = vector.shape_cast %193 : vector<1x8x8xf32> to vector<8x8xf32>
    %cst_112 = arith.constant dense<0.000000e+00> : vector<8x256xf32>
    %195 = tpu.matmul %194, %192, %cst_112 {dimension_numbers = #tpu.dot_dimension_numbers<[1], [0], [0], [1], [0, 0, 1, 1], [], []>} : vector<8x8xf32>, vector<8x256xf32>, vector<8x256xf32> -> vector<8x256xf32>
    %c4_113 = arith.constant 4 : index
    %c0_114 = arith.constant 0 : index
    %c0_115 = arith.constant 0 : index
    %196 = vector.load %arg6[%c4_113, %c0_114, %c0_115] : memref<6x8x1xf32, #tpu.memory_space<vmem>>, vector<1x8x1xf32>
    %197 = vector.shape_cast %196 : vector<1x8x1xf32> to vector<8x1xf32>
    %198 = vector.broadcast %197 : vector<8x1xf32> to vector<8x256xf32>
    %199 = arith.addf %195, %198 : vector<8x256xf32>
    %200 = math.tanh %199 : vector<8x256xf32>
    %201 = vector.extract_strided_slice %200 {offsets = [0, 0], sizes = [4, 256], strides = [1, 1]} : vector<8x256xf32> to vector<4x256xf32>
    %202 = vector.extract_strided_slice %200 {offsets = [4, 0], sizes = [4, 256], strides = [1, 1]} : vector<8x256xf32> to vector<4x256xf32>
    %cst_116 = arith.constant 5.000000e-01 : f32
    %203 = vector.broadcast %cst_116 : f32 to vector<4x256xf32>
    %204 = arith.mulf %203, %202 : vector<4x256xf32>
    %cst_117 = arith.constant 5.000000e-01 : f32
    %205 = vector.broadcast %cst_117 : f32 to vector<4x256xf32>
    %206 = arith.addf %205, %204 : vector<4x256xf32>
    %207 = arith.mulf %201, %206 : vector<4x256xf32>
    %c4_118 = arith.constant 4 : index
    %c0_119 = arith.constant 0 : index
    %c0_120 = arith.constant 0 : index
    %208 = vector.load %arg7[%c4_118, %c0_119, %c0_120] : memref<6x5x4xf32, #tpu.memory_space<vmem>>, vector<1x5x4xf32>
    %209 = vector.shape_cast %208 : vector<1x5x4xf32> to vector<5x4xf32>
    %cst_121 = arith.constant dense<0.000000e+00> : vector<5x256xf32>
    %210 = tpu.matmul %209, %207, %cst_121 {dimension_numbers = #tpu.dot_dimension_numbers<[1], [0], [0], [1], [0, 0, 1, 1], [], []>} : vector<5x4xf32>, vector<4x256xf32>, vector<5x256xf32> -> vector<5x256xf32>
    %c4_122 = arith.constant 4 : index
    %c0_123 = arith.constant 0 : index
    %c0_124 = arith.constant 0 : index
    %211 = vector.load %arg8[%c4_122, %c0_123, %c0_124] : memref<6x5x1xf32, #tpu.memory_space<vmem>>, vector<1x5x1xf32>
    %212 = vector.shape_cast %211 : vector<1x5x1xf32> to vector<5x1xf32>
    %213 = vector.broadcast %212 : vector<5x1xf32> to vector<5x256xf32>
    %214 = arith.addf %210, %213 : vector<5x256xf32>
    %215 = vector.extract_strided_slice %214 {offsets = [0, 0], sizes = [4, 256], strides = [1, 1]} : vector<5x256xf32> to vector<4x256xf32>
    %216 = arith.addf %215, %175 : vector<4x256xf32>
    %217 = vector.extract_strided_slice %214 {offsets = [4, 0], sizes = [1, 256], strides = [1, 1]} : vector<5x256xf32> to vector<1x256xf32>
    %218 = arith.addf %177, %217 : vector<1x256xf32>
    %c5 = arith.constant 5 : index
    %c0_125 = arith.constant 0 : index
    %c0_126 = arith.constant 0 : index
    %219 = vector.load %arg10[%c5, %c0_125, %c0_126] : memref<6x4x128xf32, #tpu.memory_space<vmem>>, vector<1x4x128xf32>
    %220 = vector.shape_cast %219 : vector<1x4x128xf32> to vector<4x128xf32>
    %221 = vector.extract_strided_slice %216 {offsets = [0, 128], sizes = [4, 128], strides = [1, 1]} : vector<4x256xf32> to vector<4x128xf32>
    %c5_127 = arith.constant 5 : index
    %c0_128 = arith.constant 0 : index
    %c0_129 = arith.constant 0 : index
    %222 = vector.load %arg10[%c5_127, %c0_128, %c0_129] : memref<6x4x128xf32, #tpu.memory_space<vmem>>, vector<1x4x128xf32>
    %223 = vector.shape_cast %222 : vector<1x4x128xf32> to vector<4x128xf32>
    %224 = vector.shape_cast %221 : vector<4x128xf32> to vector<1x4x128xf32>
    tpu.vector_store %arg10[%c5_127, %c0_128, %c0_129], %224 {strides = array<i32>} : memref<6x4x128xf32, #tpu.memory_space<vmem>>, vector<1x4x128xf32>,
    %c4_i32_130 = arith.constant 4 : i32
    %225 = tpu.dynamic_rotate %216 by %c4_i32_130 dim 1 : vector<4x256xf32>, i32 -> vector<4x256xf32>
    %c4_i32_131 = arith.constant 4 : i32
    %226 = tpu.dynamic_rotate %220 by %c4_i32_131 dim 1 : vector<4x128xf32>, i32 -> vector<4x128xf32>
    %c4_i32_132 = arith.constant 4 : i32
    %227 = vector.broadcast %c4_i32_132 : i32 to vector<4x128xi32>
    %228 = arith.cmpi slt, %12, %227 : vector<4x128xi32>
    %229 = vector.extract_strided_slice %225 {offsets = [0, 0], sizes = [4, 128], strides = [1, 1]} : vector<4x256xf32> to vector<4x128xf32>
    %230 = arith.select %228, %226, %229 : vector<4x128xi1>, vector<4x128xf32>
    %231 = vector.extract_strided_slice %225 {offsets = [0, 128], sizes = [4, 128], strides = [1, 1]} : vector<4x256xf32> to vector<4x128xf32>
    %232 = tpu.concatenate %230, %231 in 1 : vector<4x128xf32>, vector<4x128xf32> -> vector<4x256xf32>
    %233 = tpu.concatenate %232, %216 in 0 : vector<4x256xf32>, vector<4x256xf32> -> vector<8x256xf32>
    %c5_133 = arith.constant 5 : index
    %c0_134 = arith.constant 0 : index
    %c0_135 = arith.constant 0 : index
    %234 = vector.load %arg5[%c5_133, %c0_134, %c0_135] : memref<6x8x8xf32, #tpu.memory_space<vmem>>, vector<1x8x8xf32>
    %235 = vector.shape_cast %234 : vector<1x8x8xf32> to vector<8x8xf32>
    %cst_136 = arith.constant dense<0.000000e+00> : vector<8x256xf32>
    %236 = tpu.matmul %235, %233, %cst_136 {dimension_numbers = #tpu.dot_dimension_numbers<[1], [0], [0], [1], [0, 0, 1, 1], [], []>} : vector<8x8xf32>, vector<8x256xf32>, vector<8x256xf32> -> vector<8x256xf32>
    %c5_137 = arith.constant 5 : index
    %c0_138 = arith.constant 0 : index
    %c0_139 = arith.constant 0 : index
    %237 = vector.load %arg6[%c5_137, %c0_138, %c0_139] : memref<6x8x1xf32, #tpu.memory_space<vmem>>, vector<1x8x1xf32>
    %238 = vector.shape_cast %237 : vector<1x8x1xf32> to vector<8x1xf32>
    %239 = vector.broadcast %238 : vector<8x1xf32> to vector<8x256xf32>
    %240 = arith.addf %236, %239 : vector<8x256xf32>
    %241 = math.tanh %240 : vector<8x256xf32>
    %242 = vector.extract_strided_slice %241 {offsets = [0, 0], sizes = [4, 256], strides = [1, 1]} : vector<8x256xf32> to vector<4x256xf32>
    %243 = vector.extract_strided_slice %241 {offsets = [4, 0], sizes = [4, 256], strides = [1, 1]} : vector<8x256xf32> to vector<4x256xf32>
    %cst_140 = arith.constant 5.000000e-01 : f32
    %244 = vector.broadcast %cst_140 : f32 to vector<4x256xf32>
    %245 = arith.mulf %244, %243 : vector<4x256xf32>
    %cst_141 = arith.constant 5.000000e-01 : f32
    %246 = vector.broadcast %cst_141 : f32 to vector<4x256xf32>
    %247 = arith.addf %246, %245 : vector<4x256xf32>
    %248 = arith.mulf %242, %247 : vector<4x256xf32>
    %c5_142 = arith.constant 5 : index
    %c0_143 = arith.constant 0 : index
    %c0_144 = arith.constant 0 : index
    %249 = vector.load %arg7[%c5_142, %c0_143, %c0_144] : memref<6x5x4xf32, #tpu.memory_space<vmem>>, vector<1x5x4xf32>
    %250 = vector.shape_cast %249 : vector<1x5x4xf32> to vector<5x4xf32>
    %cst_145 = arith.constant dense<0.000000e+00> : vector<5x256xf32>
    %251 = tpu.matmul %250, %248, %cst_145 {dimension_numbers = #tpu.dot_dimension_numbers<[1], [0], [0], [1], [0, 0, 1, 1], [], []>} : vector<5x4xf32>, vector<4x256xf32>, vector<5x256xf32> -> vector<5x256xf32>
    %c5_146 = arith.constant 5 : index
    %c0_147 = arith.constant 0 : index
    %c0_148 = arith.constant 0 : index
    %252 = vector.load %arg8[%c5_146, %c0_147, %c0_148] : memref<6x5x1xf32, #tpu.memory_space<vmem>>, vector<1x5x1xf32>
    %253 = vector.shape_cast %252 : vector<1x5x1xf32> to vector<5x1xf32>
    %254 = vector.broadcast %253 : vector<5x1xf32> to vector<5x256xf32>
    %255 = arith.addf %251, %254 : vector<5x256xf32>
    %256 = vector.extract_strided_slice %255 {offsets = [4, 0], sizes = [1, 256], strides = [1, 1]} : vector<5x256xf32> to vector<1x256xf32>
    %257 = arith.addf %218, %256 : vector<1x256xf32>
    %c0_149 = arith.constant 0 : index
    %c0_150 = arith.constant 0 : index
    %c0_151 = arith.constant 0 : index
    %258 = vector.load %arg9[%c0_149, %c0_150, %c0_151] : memref<1x1x256xf32, #tpu.memory_space<vmem>>, vector<1x1x256xf32>
    %259 = vector.shape_cast %258 : vector<1x1x256xf32> to vector<1x256xf32>
    %260 = vector.shape_cast %257 : vector<1x256xf32> to vector<1x1x256xf32>
    tpu.vector_store %arg9[%c0_149, %c0_150, %c0_151], %260 {strides = array<i32>} : memref<1x1x256xf32, #tpu.memory_space<vmem>>, vector<1x1x256xf32>,
    return
  }
  func.func @transform_0(%arg0: i32, %arg1: i32) -> (i32, i32, i32) {
    %c0_i32 = arith.constant 0 : i32
    %c0_i32_0 = arith.constant 0 : i32
    return %arg0, %c0_i32, %arg1 : i32, i32, i32
  }
  func.func @transform_1(%arg0: i32, %arg1: i32) -> (i32, i32) {
    %c0_i32 = arith.constant 0 : i32
    %c0_i32_0 = arith.constant 0 : i32
    %c0_i32_1 = arith.constant 0 : i32
    return %c0_i32, %c0_i32_0 : i32, i32
  }
  func.func @transform_2(%arg0: i32, %arg1: i32) -> (i32, i32) {
    %c0_i32 = arith.constant 0 : i32
    %c0_i32_0 = arith.constant 0 : i32
    %c0_i32_1 = arith.constant 0 : i32
    return %c0_i32, %c0_i32_0 : i32, i32
  }
  func.func @transform_3(%arg0: i32, %arg1: i32) -> (i32, i32, i32) {
    %c0_i32 = arith.constant 0 : i32
    %c0_i32_0 = arith.constant 0 : i32
    %c0_i32_1 = arith.constant 0 : i32
    %c0_i32_2 = arith.constant 0 : i32
    return %c0_i32, %c0_i32_0, %c0_i32_1 : i32, i32, i32
  }
  func.func @transform_4(%arg0: i32, %arg1: i32) -> (i32, i32, i32) {
    %c0_i32 = arith.constant 0 : i32
    %c0_i32_0 = arith.constant 0 : i32
    %c0_i32_1 = arith.constant 0 : i32
    %c0_i32_2 = arith.constant 0 : i32
    return %c0_i32, %c0_i32_0, %c0_i32_1 : i32, i32, i32
  }
  func.func @transform_5(%arg0: i32, %arg1: i32) -> (i32, i32, i32) {
    %c0_i32 = arith.constant 0 : i32
    %c0_i32_0 = arith.constant 0 : i32
    %c0_i32_1 = arith.constant 0 : i32
    %c0_i32_2 = arith.constant 0 : i32
    return %c0_i32, %c0_i32_0, %c0_i32_1 : i32, i32, i32
  }
  func.func @transform_6(%arg0: i32, %arg1: i32) -> (i32, i32, i32) {
    %c0_i32 = arith.constant 0 : i32
    %c0_i32_0 = arith.constant 0 : i32
    %c0_i32_1 = arith.constant 0 : i32
    %c0_i32_2 = arith.constant 0 : i32
    return %c0_i32, %c0_i32_0, %c0_i32_1 : i32, i32, i32
  }
  func.func @transform_7(%arg0: i32, %arg1: i32) -> (i32, i32, i32) {
    %c0_i32 = arith.constant 0 : i32
    %c0_i32_0 = arith.constant 0 : i32
    return %arg0, %c0_i32, %arg1 : i32, i32, i32
  }
}

</mosaic_0001>

<llo_original>
// kernel: tpu_custom_call.1
$region0: #{tpu_custom_call.1}
  #allocation0 [shape = 'u32[]', space=smem, size = 0x4, offset = 0x4, fixed_abs, tag = 'smem constant byte address 0x4 - core index']
  #allocation1 [shape = 'u32[144,128]{1,0:T(1,128)}', space=vmem, size = 0x12000, scoped, tag = 'internal scratch']
  #allocation2 [shape = 'f32[6,4,128]{2,1,0:T(4,128)}', space=vmem, size = 0x3000, scoped, tag = 'scratch operand']
  %s0 = inlined_call_operand.vmem [shape: f32[2,1,512], index: 0, kind: input, shape index: {}]
  %s1 = inlined_call_operand.vmem [shape: f32[4,1], index: 1, kind: input, shape index: {}]
  %s2 = inlined_call_operand.vmem [shape: f32[4,1], index: 2, kind: input, shape index: {}]
  %s3 = inlined_call_operand.vmem [shape: f32[6,8,8], index: 3, kind: input, shape index: {}]
  %s4 = inlined_call_operand.vmem [shape: f32[6,8,1], index: 4, kind: input, shape index: {}]
  %s5 = inlined_call_operand.vmem [shape: f32[6,5,4], index: 5, kind: input, shape index: {}]
  %s6 = inlined_call_operand.vmem [shape: f32[6,5,1], index: 6, kind: input, shape index: {}]
  %s7 = inlined_call_operand.hbm [shape: f32[2,1,512], index: 7, kind: output, shape index: {}]
  %s8 = sld [smem:[#allocation0]]
  $region65: #{tpu_custom_call.1} parent=0
    _
  %s10 = ssub.s32 1, %s8
  %s11 = scalar_select 0, %s10, %s8
  $region1: #{tpu_custom_call.1} parent=0
    #allocation3 [shape = 'u8[2048]{0}', space=vmem, size = 0x800, scoped, tag = 'output window, operand 0']
    #allocation4 [shape = 's32[2]{0}', space=sflag, size = 0x8, scoped, tag = 'scoped memory for tpu_custom_call.1']
    %12 = vsyncpa [#allocation4], 0
    %s13 = scalar_lea.sflag [#allocation4], 1
    %14 = vsyncpa %s13, 0
    loop: start=0, step=1, limit=6
    $region2: #{tpu_custom_call.1} parent=1 // loop_pre_header
      _
    $region3: #{tpu_custom_call.1} parent=1 // loop_header
      %s16 = sphi 0, %s20
      %p17 = scmp.ge.s32.totalorder %s16, 6
      %s23 = sphi 0, %s35
      %s24 = sphi 0, %s31
      %s25 = sphi 0, %s23
      %s26 = sphi 0, %s24
      %s27 = sphi 0, %s25
      %s28 = sphi 0, %s26
      %s40 = sphi 0, %s42
      %s43 = sphi 0, %s40
      %s44 = sphi 0, %s43
      %s60 = sphi 0, %s44
      %s64 = sphi 0, %s64
      %s66 = sphi 0, %s64
      %s67 = sphi 0, %s66
      %s81 = sphi 0, %s67
      %s85 = sphi 0, %s85
      %s87 = sphi 0, %s85
      %s88 = sphi 0, %s87
      %s102 = sphi 0, %s88
      %s106 = sphi 0, %s106
      %s108 = sphi 0, %s106
      %s109 = sphi 0, %s108
      %s123 = sphi 0, %s109
      %s127 = sphi 0, %s127
      %s129 = sphi 0, %s127
      %s130 = sphi 0, %s129
      %s144 = sphi 0, %s130
      %s148 = sphi 0, %s148
      %s150 = sphi 0, %s148
      %s151 = sphi 0, %s150
      %s165 = sphi 0, %s151
      %s169 = sphi 0, %s169
      %s171 = sphi 0, %s169
      %s172 = sphi 0, %s171
      %s186 = sphi 0, %s172
      %s194 = sphi 0, %s196
      %s197 = sphi 0, %s194
      %s198 = sphi 0, %s197
      %s214 = sphi 0, %s198
    $region4: #{tpu_custom_call.1} parent=1 // loop_header_branch
      %19 = sbr.rel (%p17) target = $region8
    $region5: #{tpu_custom_call.1} parent=1 // loop_body
      %s21 = ssub.s32 %s16, 1
      %s22 = ssub.s32 %s16, 2
      %s29 = sadd.s32 1, %s24
      %p30 = scmp.ge.s32.totalorder %s29, 2
      %s31 = scalar_select %p30, 0, %s29
      %s32 = sadd.s32 1, %s23
      %s33 = scalar_select %p30, %s32, %s23
      %p34 = scmp.ge.s32.totalorder %s33, 2
      %s35 = scalar_select %p34, 0, %s33
      %s36 = ssub.s32 %s23, %s35
      %s37 = ssub.s32 %s24, %s31
      %s38 = sor.u32 %s36, %s37
      %p39 = scmp.eq.s32.totalorder %s38, 0
      %s41 = sadd.s32 %s40, 1
      %s42 = scalar_select %p39, %s40, %s41
      %p45 = pneg %p39
      %p46 = scmp.eq.s32.totalorder %s16, 3
      %p47 = por %p45, %p46
      %p48 = scmp.ne.s32.totalorder %s40, %s43
      %p49 = scmp.eq.s32.totalorder %s16, 0
      %p50 = por %p48, %p49
      %p51 = scmp.ne.s32.totalorder %s40, %s43
      %p52 = scmp.eq.s32.totalorder %s21, 3
      %p53 = por %p51, %p52
      %p54 = scmp.ne.s32.totalorder %s43, %s44
      %p55 = scmp.eq.s32.totalorder %s21, 0
      %p56 = por %p54, %p55
      %p57 = scmp.ne.s32.totalorder %s43, %s44
      %p58 = scmp.eq.s32.totalorder %s22, 3
      %p59 = por %p57, %p58
      %p61 = scmp.ne.s32.totalorder %s44, %s60
      %p62 = scmp.eq.s32.totalorder %s22, 0
      %p63 = por %p61, %p62
      %s65 = sadd.s32 %s64, 1
      %p68 = scmp.eq.s32.totalorder %s16, 3
      %p69 = scmp.ne.s32.totalorder %s64, %s66
      %p70 = scmp.eq.s32.totalorder %s16, 0
      %p71 = por %p69, %p70
      %p72 = scmp.ne.s32.totalorder %s64, %s66
      %p73 = scmp.eq.s32.totalorder %s21, 3
      %p74 = por %p72, %p73
      %p75 = scmp.ne.s32.totalorder %s66, %s67
      %p76 = scmp.eq.s32.totalorder %s21, 0
      %p77 = por %p75, %p76
      %p78 = scmp.ne.s32.totalorder %s66, %s67
      %p79 = scmp.eq.s32.totalorder %s22, 3
      %p80 = por %p78, %p79
      %p82 = scmp.ne.s32.totalorder %s67, %s81
      %p83 = scmp.eq.s32.totalorder %s22, 0
      %p84 = por %p82, %p83
      %s86 = sadd.s32 %s85, 1
      %p89 = scmp.eq.s32.totalorder %s16, 3
      %p90 = scmp.ne.s32.totalorder %s85, %s87
      %p91 = scmp.eq.s32.totalorder %s16, 0
      %p92 = por %p90, %p91
      %p93 = scmp.ne.s32.totalorder %s85, %s87
      %p94 = scmp.eq.s32.totalorder %s21, 3
      %p95 = por %p93, %p94
      %p96 = scmp.ne.s32.totalorder %s87, %s88
      %p97 = scmp.eq.s32.totalorder %s21, 0
      %p98 = por %p96, %p97
      %p99 = scmp.ne.s32.totalorder %s87, %s88
      %p100 = scmp.eq.s32.totalorder %s22, 3
      %p101 = por %p99, %p100
      %p103 = scmp.ne.s32.totalorder %s88, %s102
      %p104 = scmp.eq.s32.totalorder %s22, 0
      %p105 = por %p103, %p104
      %s107 = sadd.s32 %s106, 1
      %p110 = scmp.eq.s32.totalorder %s16, 3
      %p111 = scmp.ne.s32.totalorder %s106, %s108
      %p112 = scmp.eq.s32.totalorder %s16, 0
      %p113 = por %p111, %p112
      %p114 = scmp.ne.s32.totalorder %s106, %s108
      %p115 = scmp.eq.s32.totalorder %s21, 3
      %p116 = por %p114, %p115
      %p117 = scmp.ne.s32.totalorder %s108, %s109
      %p118 = scmp.eq.s32.totalorder %s21, 0
      %p119 = por %p117, %p118
      %p120 = scmp.ne.s32.totalorder %s108, %s109
      %p121 = scmp.eq.s32.totalorder %s22, 3
      %p122 = por %p120, %p121
      %p124 = scmp.ne.s32.totalorder %s109, %s123
      %p125 = scmp.eq.s32.totalorder %s22, 0
      %p126 = por %p124, %p125
      %s128 = sadd.s32 %s127, 1
      %p131 = scmp.eq.s32.totalorder %s16, 3
      %p132 = scmp.ne.s32.totalorder %s127, %s129
      %p133 = scmp.eq.s32.totalorder %s16, 0
      %p134 = por %p132, %p133
      %p135 = scmp.ne.s32.totalorder %s127, %s129
      %p136 = scmp.eq.s32.totalorder %s21, 3
      %p137 = por %p135, %p136
      %p138 = scmp.ne.s32.totalorder %s129, %s130
      %p139 = scmp.eq.s32.totalorder %s21, 0
      %p140 = por %p138, %p139
      %p141 = scmp.ne.s32.totalorder %s129, %s130
      %p142 = scmp.eq.s32.totalorder %s22, 3
      %p143 = por %p141, %p142
      %p145 = scmp.ne.s32.totalorder %s130, %s144
      %p146 = scmp.eq.s32.totalorder %s22, 0
      %p147 = por %p145, %p146
      %s149 = sadd.s32 %s148, 1
      %p152 = scmp.eq.s32.totalorder %s16, 3
      %p153 = scmp.ne.s32.totalorder %s148, %s150
      %p154 = scmp.eq.s32.totalorder %s16, 0
      %p155 = por %p153, %p154
      %p156 = scmp.ne.s32.totalorder %s148, %s150
      %p157 = scmp.eq.s32.totalorder %s21, 3
      %p158 = por %p156, %p157
      %p159 = scmp.ne.s32.totalorder %s150, %s151
      %p160 = scmp.eq.s32.totalorder %s21, 0
      %p161 = por %p159, %p160
      %p162 = scmp.ne.s32.totalorder %s150, %s151
      %p163 = scmp.eq.s32.totalorder %s22, 3
      %p164 = por %p162, %p163
      %p166 = scmp.ne.s32.totalorder %s151, %s165
      %p167 = scmp.eq.s32.totalorder %s22, 0
      %p168 = por %p166, %p167
      %s170 = sadd.s32 %s169, 1
      %p173 = scmp.eq.s32.totalorder %s16, 3
      %p174 = scmp.ne.s32.totalorder %s169, %s171
      %p175 = scmp.eq.s32.totalorder %s16, 0
      %p176 = por %p174, %p175
      %p177 = scmp.ne.s32.totalorder %s169, %s171
      %p178 = scmp.eq.s32.totalorder %s21, 3
      %p179 = por %p177, %p178
      %p180 = scmp.ne.s32.totalorder %s171, %s172
      %p181 = scmp.eq.s32.totalorder %s21, 0
      %p182 = por %p180, %p181
      %p183 = scmp.ne.s32.totalorder %s171, %s172
      %p184 = scmp.eq.s32.totalorder %s22, 3
      %p185 = por %p183, %p184
      %p187 = scmp.ne.s32.totalorder %s172, %s186
      %p188 = scmp.eq.s32.totalorder %s22, 0
      %p189 = por %p187, %p188
      %s190 = ssub.s32 %s23, %s35
      %s191 = ssub.s32 %s24, %s31
      %s192 = sor.u32 %s190, %s191
      %p193 = scmp.eq.s32.totalorder %s192, 0
      %s195 = sadd.s32 %s194, 1
      %s196 = scalar_select %p193, %s194, %s195
      %p199 = pneg %p193
      %p200 = scmp.eq.s32.totalorder %s16, 3
      %p201 = por %p199, %p200
      %p202 = scmp.ne.s32.totalorder %s194, %s197
      %p203 = scmp.eq.s32.totalorder %s16, 0
      %p204 = por %p202, %p203
      %p205 = scmp.ne.s32.totalorder %s194, %s197
      %p206 = scmp.eq.s32.totalorder %s21, 3
      %p207 = por %p205, %p206
      %p208 = scmp.ne.s32.totalorder %s197, %s198
      %p209 = scmp.eq.s32.totalorder %s21, 0
      %p210 = por %p208, %p209
      %p211 = scmp.ne.s32.totalorder %s197, %s198
      %p212 = scmp.eq.s32.totalorder %s22, 3
      %p213 = por %p211, %p212
      %p215 = scmp.ne.s32.totalorder %s198, %s214
      %p216 = scmp.eq.s32.totalorder %s22, 0
      %p217 = por %p215, %p216
      %p218 = scmp.le.s32.totalorder 1, %s16
      %p219 = scmp.lt.s32.totalorder %s16, 5
      %p220 = pnand %p218, %p219
      %p221 = pneg %p220
      // Predicated region
      $region9: #{tpu_custom_call.1} parent=5 // pred_check
        _
      $region10: #{tpu_custom_call.1} parent=5 // pred_check_branch
        %223 = sbr.rel (%p220) target = $region12
      $region11: #{tpu_custom_call.1} parent=5 // pred_region
        %s224 = ssub.s32 %s16, 1
        // Predicated region
        $region13: #{tpu_custom_call.1} parent=11 // pred_check
          %p225 = pneg %p77
        $region14: #{tpu_custom_call.1} parent=11 // pred_check_branch
          %227 = sbr.rel (%p225) target = $region16
        $region15: #{tpu_custom_call.1} parent=11 // pred_region
          _
        $region16: #{tpu_custom_call.1} parent=11 // pred_fallthru
          _
        // Predicated region
        $region17: #{tpu_custom_call.1} parent=11 // pred_check
          %p228 = pneg %p98
        $region18: #{tpu_custom_call.1} parent=11 // pred_check_branch
          %230 = sbr.rel (%p228) target = $region20
        $region19: #{tpu_custom_call.1} parent=11 // pred_region
          _
        $region20: #{tpu_custom_call.1} parent=11 // pred_fallthru
          _
        // Predicated region
        $region21: #{tpu_custom_call.1} parent=11 // pred_check
          %p231 = pneg %p119
        $region22: #{tpu_custom_call.1} parent=11 // pred_check_branch
          %233 = sbr.rel (%p231) target = $region24
        $region23: #{tpu_custom_call.1} parent=11 // pred_region
          _
        $region24: #{tpu_custom_call.1} parent=11 // pred_fallthru
          _
        // Predicated region
        $region25: #{tpu_custom_call.1} parent=11 // pred_check
          %p234 = pneg %p140
        $region26: #{tpu_custom_call.1} parent=11 // pred_check_branch
          %236 = sbr.rel (%p234) target = $region28
        $region27: #{tpu_custom_call.1} parent=11 // pred_region
          _
        $region28: #{tpu_custom_call.1} parent=11 // pred_fallthru
          _
        // Predicated region
        $region29: #{tpu_custom_call.1} parent=11 // pred_check
          %p237 = pneg %p161
        $region30: #{tpu_custom_call.1} parent=11 // pred_check_branch
          %239 = sbr.rel (%p237) target = $region32
        $region31: #{tpu_custom_call.1} parent=11 // pred_region
          _
        $region32: #{tpu_custom_call.1} parent=11 // pred_fallthru
          _
        // Predicated region
        $region33: #{tpu_custom_call.1} parent=11 // pred_check
          %p240 = pneg %p182
        $region34: #{tpu_custom_call.1} parent=11 // pred_check_branch
          %242 = sbr.rel (%p240) target = $region36
        $region35: #{tpu_custom_call.1} parent=11 // pred_region
          _
        $region36: #{tpu_custom_call.1} parent=11 // pred_fallthru
          _
      $region12: #{tpu_custom_call.1} parent=5 // pred_fallthru
        _
      %p243 = scmp.lt.s32.totalorder %s16, 4
      // Predicated region
      $region37: #{tpu_custom_call.1} parent=5 // pred_check
        %p244 = pneg %p243
      $region38: #{tpu_custom_call.1} parent=5 // pred_check_branch
        %246 = sbr.rel (%p244) target = $region40
      $region39: #{tpu_custom_call.1} parent=5 // pred_region
        // Predicated region
        $region41: #{tpu_custom_call.1} parent=39 // pred_check
          %p247 = pneg %p50
        $region42: #{tpu_custom_call.1} parent=39 // pred_check_branch
          %249 = sbr.rel (%p247) target = $region44
        $region43: #{tpu_custom_call.1} parent=39 // pred_region
          %s250 = smul.u32 2, %s24
          %p251 = scmp.lt.s32.totalorder %s23, 1
          %s252 = scalar_select %p251, %s23, 1
          %p253 = scmp.lt.s32.totalorder %s250, 3
          %s254 = scalar_select %p253, %s250, 3
          %s255 = smul.addr %s252, 4
          %s256 = sadd.s32 %s254, %s255
          %s257 = scalar_lea.vmem %s0, %s256
          %s258 = smul.u32 2, %s24
        $region44: #{tpu_custom_call.1} parent=39 // pred_fallthru
          _
      $region40: #{tpu_custom_call.1} parent=5 // pred_fallthru
        _
      %p259 = scmp.le.s32.totalorder 1, %s16
      %p260 = scmp.lt.s32.totalorder %s16, 5
      %p261 = pnand %p259, %p260
      %p262 = pneg %p261
      // Predicated region
      $region45: #{tpu_custom_call.1} parent=5 // pred_check
        _
      $region46: #{tpu_custom_call.1} parent=5 // pred_check_branch
        %264 = sbr.rel (%p261) target = $region48
      $region47: #{tpu_custom_call.1} parent=5 // pred_region
        %s265 = ssub.s32 %s16, 1
        %s266 = smul.u32 2, %s26
        %p267 = scmp.lt.s32.totalorder %s25, 1
        %s268 = scalar_select %p267, %s25, 1
        %p269 = scmp.lt.s32.totalorder %s266, 3
        %s270 = scalar_select %p269, %s266, 3
        %s271 = smul.addr %s268, 4
        %s272 = sadd.s32 %s270, %s271
        %s273 = scalar_lea.vmem %s0, %s272
        %p274 = pneg %p56
        %p275 = pneg %p53
        %p276 = pneg %p77
        %p277 = pneg %p74
        %p278 = pneg %p98
        %p279 = pneg %p95
        %p280 = pneg %p119
        %p281 = pneg %p116
        %p282 = pneg %p140
        %p283 = pneg %p137
        %p284 = pneg %p161
        %p285 = pneg %p158
        %p286 = pneg %p182
        %p287 = pneg %p179
        %p288 = pneg %p210
        %p289 = pneg %p207
        %s290 = sand.u32 %s197, 1
        %s291 = scalar_lea.sflag [#allocation4], %s290
        %s292 = sand.u32 %s197, 1
        %s293 = smul.addr %s292, 2
        %s294 = scalar_lea.vmem [#allocation3], %s293
        %s295 = smul.u32 2, %s26
        %p296 = scmp.lt.s32.totalorder %s25, 1
        %s297 = scalar_select %p296, %s25, 1
        %p298 = scmp.lt.s32.totalorder %s295, 3
        %s299 = scalar_select %p298, %s295, 3
        %s300 = smul.addr %s297, 4
        %s301 = sadd.s32 %s299, %s300
        %s302 = scalar_lea.vmem %s0, %s301
        %s303 = smul.u32 2, %s26
        %s304 = smul.u32 2, %s26
        %p305 = scmp.eq.s32.totalorder %s26, 0
        // Predicated region
        $region49: #{tpu_custom_call.1} parent=47 // pred_check
          %p306 = pneg %p305
        $region50: #{tpu_custom_call.1} parent=47 // pred_check_branch
          %308 = sbr.rel (%p306) target = $region52
        $region51: #{tpu_custom_call.1} parent=47 // pred_region
          %309 = vst [vmem:[#allocation2] sm:$0xf] 0.0
          %310 = vst [vmem:[#allocation2 + $0x4] sm:$0xf] 0.0
          %311 = vst [vmem:[#allocation2 + $0x8] sm:$0xf] 0.0
          %312 = vst [vmem:[#allocation2 + $0xc] sm:$0xf] 0.0
          %313 = vst [vmem:[#allocation2 + $0x10] sm:$0xf] 0.0
          %314 = vst [vmem:[#allocation2 + $0x14] sm:$0xf] 0.0
        $region52: #{tpu_custom_call.1} parent=47 // pred_fallthru
          _
        %v315 = vld [vmem:[%s302] sm:$0x3]
        %v316 = vld [vmem:[%s1] sm:$0xf]
        %v317 = vld [vmem:[%s2] sm:$0xf]
        %319 = vset.pattern.permute.xlu0 0
        %320 = vperm.xlu0 %319, %v316
        %v321 = vpop.permute.xlu0 %320
        %v324 = vlaneseq
        %v325 = vshrl.u32 %v324, 7
        %v326 = vsub.s32 0, %v325
        %v327 = vrot.slane %v315, %v326
        %v328 = vlaneseq
        %v329 = vshrl.u32 %v328, 7
        %v330 = vsub.s32 1, %v329
        %v331 = vrot.slane %v315, %v330
        %v334 = vmul.f32 %v321, %v327
        %v335 = vmul.f32 %v321, %v331
        %337 = vset.pattern.permute.xlu0 0
        %338 = vperm.xlu0 %337, %v317
        %v339 = vpop.permute.xlu0 %338
        %v341 = vadd.f32 %v334, %v339
        %v342 = vadd.f32 %v335, %v339
        %v343 = vlaneseq
        %v344 = vand.u32 %v343, 127
        %v345 = vld [vmem:[#allocation2] sm:$0xf]
        %346 = vst [vmem:[#allocation2] sm:$0xf] %v342
        %347 = vrot.lane.b32.xlu0 %v341, 1
        %v348 = vpop.permute.xlu0 %347
        %349 = vrot.lane.b32.xlu0 %v342, 1
        %v350 = vpop.permute.xlu0 %349
        %vm351 = vcmp.lt.s32.totalorder %v344, 1
        %v352 = vsel %vm351, %v348, %v350
        %v353 = vsel %vm351, %v350, %v348
        %354 = vrot.lane.b32.xlu0 %v345, 1
        %v355 = vpop.permute.xlu0 %354
        %v356 = vsel %vm351, %v355, %v353
        %v359 = vrot.slane %v341, 4
        %v360 = vrot.slane %v342, 4
        %vm363 = vcmask 1043456
        %v364 = vsel %vm363, %v356, %v359
        %v365 = vsel %vm363, %v352, %v360
        %v366 = vld [vmem:[%s3] sm:$0xff]
        %v367 = vld [vmem:[%s4] sm:$0xff]
        %369 = vset.pattern.permute.xlu0 0
        %370 = vperm.xlu0 %369, %v367
        %v371 = vpop.permute.xlu0 %370
        %vm373 = vcmask 64512
        %v375 = vsel %vm373, %v366, 0
        %377 = vmatprep.subr.mxu0 %v365
        %378 = vmatpush1.msra.mxu0 %v364
        %379 = vmatprep.subr.mxu0 0.0
        %380 = vmatpush1.msra.mxu0 0.0
        %381 = vmatprep.subr.mxu0 0.0
        %382 = vmatpush1.msra.mxu0 0.0
        %383 = vmatprep.subr.mxu0 0.0
        %384 = vmatpush1.msra.mxu0 0.0
        %385 = vmatprep.subr.mxu0 0.0
        %386 = vmatpush1.msra.mxu0 0.0
        %387 = vmatprep.subr.mxu0 0.0
        %388 = vmatpush1.msra.mxu0 0.0
        %389 = vmatprep.subr.mxu0 0.0
        %390 = vmatpush1.msra.mxu0 0.0
        %391 = vmatprep.subr.mxu0 0.0
        %392 = vmatpush1.msra.mxu0 0.0
        %393 = vmatprep.subr.mxu0 0.0
        %394 = vmatpush1.msra.mxu0 0.0
        %395 = vmatprep.subr.mxu0 0.0
        %396 = vmatpush1.msra.mxu0 0.0
        %397 = vmatprep.subr.mxu0 0.0
        %398 = vmatpush1.msra.mxu0 0.0
        %399 = vmatprep.subr.mxu0 0.0
        %400 = vmatpush1.msra.mxu0 0.0
        %401 = vmatprep.subr.mxu0 0.0
        %402 = vmatpush1.msra.mxu0 0.0
        %403 = vmatprep.subr.mxu0 0.0
        %404 = vmatpush1.msra.mxu0 0.0
        %405 = vmatprep.subr.mxu0 0.0
        %406 = vmatpush1.msra.mxu0 0.0
        %407 = vmatprep.subr.mxu0 0.0
        %408 = vmatpush1.msra.mxu0 0.0
        %409 = vmatprep.subr.mxu0 0.0
        %410 = vmatpush1.msra.mxu0 0.0
        %411 = vmatprep.subr.mxu0 0.0
        %412 = vmatpush1.msra.mxu0 0.0
        %413 = vmatprep.subr.mxu0 0.0
        %414 = vmatpush1.msra.mxu0 0.0
        %415 = vmatprep.subr.mxu0 0.0
        %416 = vmatpush1.msra.mxu0 0.0
        %417 = vmatprep.subr.mxu0 0.0
        %418 = vmatpush1.msra.mxu0 0.0
        %419 = vmatprep.subr.mxu0 0.0
        %420 = vmatpush1.msra.mxu0 0.0
        %421 = vmatprep.subr.mxu0 0.0
        %422 = vmatpush1.msra.mxu0 0.0
        %423 = vmatprep.subr.mxu0 0.0
        %424 = vmatpush1.msra.mxu0 0.0
        %425 = vmatprep.subr.mxu0 0.0
        %426 = vmatpush1.msra.mxu0 0.0
        %427 = vmatprep.subr.mxu0 0.0
        %428 = vmatpush1.msra.mxu0 0.0
        %429 = vmatprep.subr.mxu0 0.0
        %430 = vmatpush1.msra.mxu0 0.0
        %431 = vmatprep.subr.mxu0 0.0
        %432 = vmatpush1.msra.mxu0 0.0
        %433 = vmatprep.subr.mxu0 0.0
        %434 = vmatpush1.msra.mxu0 0.0
        %435 = vmatprep.subr.mxu0 0.0
        %436 = vmatpush1.msra.mxu0 0.0
        %437 = vmatprep.subr.mxu0 0.0
        %438 = vmatpush1.msra.mxu0 0.0
        %439 = vmatprep.subr.mxu0 0.0
        %440 = vmatpush1.msra.mxu0 0.0
        %441 = vmatprep.mubr.f32.mxu0 0.0
        %442 = vmatmul.mubr.f32.gmra.mrb[0].mxu0 %v375
        %v443 = vpop.f32.mrb[0].mxu0
        %v444 = vadd.f32 %v371, %v443
        %v445 = vpop.f32.mrb[0].mxu0
        %v446 = vadd.f32 %v371, %v445
        %447 = vdwg.mxu0
        %v448 = vtanh.pop %v444
        %v449 = vtanh.pop %v446
        %v450 = vmul.f32 %v448, 0.5
        %v451 = vmul.f32 %v449, 0.5
        %v452 = vadd.f32 %v450, 0.5
        %v453 = vadd.f32 %v451, 0.5
        %v456 = vrot.slane %v452, 4
        %v457 = vrot.slane %v453, 4
        %v460 = vmul.f32 %v448, %v456
        %v461 = vmul.f32 %v449, %v457
        %v462 = vld [vmem:[%s5] sm:$0x1f]
        %v463 = vld [vmem:[%s6] sm:$0x1f]
        %465 = vset.pattern.permute.xlu0 0
        %466 = vperm.xlu0 %465, %v463
        %v467 = vpop.permute.xlu0 %466
        %vm469 = vcmask 31744
        %v471 = vsel %vm469, %v462, 0
        %v474 = vsel %vm363, %v460, 0
        %v477 = vsel %vm363, %v461, 0
        %479 = vmatprep.subr.mxu0 %v477
        %480 = vmatpush1.msra.mxu0 %v474
        %481 = vmatprep.subr.mxu0 0.0
        %482 = vmatpush1.msra.mxu0 0.0
        %483 = vmatprep.subr.mxu0 0.0
        %484 = vmatpush1.msra.mxu0 0.0
        %485 = vmatprep.subr.mxu0 0.0
        %486 = vmatpush1.msra.mxu0 0.0
        %487 = vmatprep.subr.mxu0 0.0
        %488 = vmatpush1.msra.mxu0 0.0
        %489 = vmatprep.subr.mxu0 0.0
        %490 = vmatpush1.msra.mxu0 0.0
        %491 = vmatprep.subr.mxu0 0.0
        %492 = vmatpush1.msra.mxu0 0.0
        %493 = vmatprep.subr.mxu0 0.0
        %494 = vmatpush1.msra.mxu0 0.0
        %495 = vmatprep.subr.mxu0 0.0
        %496 = vmatpush1.msra.mxu0 0.0
        %497 = vmatprep.subr.mxu0 0.0
        %498 = vmatpush1.msra.mxu0 0.0
        %499 = vmatprep.subr.mxu0 0.0
        %500 = vmatpush1.msra.mxu0 0.0
        %501 = vmatprep.subr.mxu0 0.0
        %502 = vmatpush1.msra.mxu0 0.0
        %503 = vmatprep.subr.mxu0 0.0
        %504 = vmatpush1.msra.mxu0 0.0
        %505 = vmatprep.subr.mxu0 0.0
        %506 = vmatpush1.msra.mxu0 0.0
        %507 = vmatprep.subr.mxu0 0.0
        %508 = vmatpush1.msra.mxu0 0.0
        %509 = vmatprep.subr.mxu0 0.0
        %510 = vmatpush1.msra.mxu0 0.0
        %511 = vmatprep.subr.mxu0 0.0
        %512 = vmatpush1.msra.mxu0 0.0
        %513 = vmatprep.subr.mxu0 0.0
        %514 = vmatpush1.msra.mxu0 0.0
        %515 = vmatprep.subr.mxu0 0.0
        %516 = vmatpush1.msra.mxu0 0.0
        %517 = vmatprep.subr.mxu0 0.0
        %518 = vmatpush1.msra.mxu0 0.0
        %519 = vmatprep.subr.mxu0 0.0
        %520 = vmatpush1.msra.mxu0 0.0
        %521 = vmatprep.subr.mxu0 0.0
        %522 = vmatpush1.msra.mxu0 0.0
        %523 = vmatprep.subr.mxu0 0.0
        %524 = vmatpush1.msra.mxu0 0.0
        %525 = vmatprep.subr.mxu0 0.0
        %526 = vmatpush1.msra.mxu0 0.0
        %527 = vmatprep.subr.mxu0 0.0
        %528 = vmatpush1.msra.mxu0 0.0
        %529 = vmatprep.subr.mxu0 0.0
        %530 = vmatpush1.msra.mxu0 0.0
        %531 = vmatprep.subr.mxu0 0.0
        %532 = vmatpush1.msra.mxu0 0.0
        %533 = vmatprep.subr.mxu0 0.0
        %534 = vmatpush1.msra.mxu0 0.0
        %535 = vmatprep.subr.mxu0 0.0
        %536 = vmatpush1.msra.mxu0 0.0
        %537 = vmatprep.subr.mxu0 0.0
        %538 = vmatpush1.msra.mxu0 0.0
        %539 = vmatprep.subr.mxu0 0.0
        %540 = vmatpush1.msra.mxu0 0.0
        %541 = vmatprep.subr.mxu0 0.0
        %542 = vmatpush1.msra.mxu0 0.0
        %543 = vmatprep.mubr.f32.mxu0 0.0
        %544 = vmatmul.mubr.f32.gmra.mrb[0].mxu0 %v471
        %v545 = vpop.f32.mrb[0].mxu0
        %v546 = vadd.f32 %v467, %v545
        %v547 = vpop.f32.mrb[0].mxu0
        %v548 = vadd.f32 %v467, %v547
        %549 = vdwg.mxu0
        %v550 = vadd.f32 %v546, %v341
        %v551 = vadd.f32 %v548, %v342
        %v552 = vadd.f32 %v546, 0.0
        %v553 = vadd.f32 %v548, 0.0
        %s554 = scalar_lea.vmem [#allocation2], 4
        %v555 = vld [vmem:[%s554] sm:$0xf]
        %556 = vst [vmem:[%s554] sm:$0xf] %v551
        %557 = vrot.lane.b32.xlu0 %v550, 2
        %v558 = vpop.permute.xlu0 %557
        %559 = vrot.lane.b32.xlu0 %v551, 2
        %v560 = vpop.permute.xlu0 %559
        %vm561 = vcmp.lt.s32.totalorder %v344, 2
        %v562 = vsel %vm561, %v558, %v560
        %v563 = vsel %vm561, %v560, %v558
        %564 = vrot.lane.b32.xlu0 %v555, 2
        %v565 = vpop.permute.xlu0 %564
        %v566 = vsel %vm561, %v565, %v563
        %v569 = vrot.slane %v550, 4
        %v570 = vrot.slane %v551, 4
        %v573 = vsel %vm363, %v566, %v569
        %v574 = vsel %vm363, %v562, %v570
        %s575 = scalar_lea.vmem %s3, 8
        %v576 = vld [vmem:[%s575] sm:$0xff]
        %s577 = scalar_lea.vmem %s4, 8
        %v578 = vld [vmem:[%s577] sm:$0xff]
        %580 = vset.pattern.permute.xlu0 0
        %581 = vperm.xlu0 %580, %v578
        %v582 = vpop.permute.xlu0 %581
        %v585 = vsel %vm373, %v576, 0
        %587 = vmatprep.subr.mxu0 %v574
        %588 = vmatpush1.msra.mxu0 %v573
        %589 = vmatprep.subr.mxu0 0.0
        %590 = vmatpush1.msra.mxu0 0.0
        %591 = vmatprep.subr.mxu0 0.0
        %592 = vmatpush1.msra.mxu0 0.0
        %593 = vmatprep.subr.mxu0 0.0
        %594 = vmatpush1.msra.mxu0 0.0
        %595 = vmatprep.subr.mxu0 0.0
        %596 = vmatpush1.msra.mxu0 0.0
        %597 = vmatprep.subr.mxu0 0.0
        %598 = vmatpush1.msra.mxu0 0.0
        %599 = vmatprep.subr.mxu0 0.0
        %600 = vmatpush1.msra.mxu0 0.0
        %601 = vmatprep.subr.mxu0 0.0
        %602 = vmatpush1.msra.mxu0 0.0
        %603 = vmatprep.subr.mxu0 0.0
        %604 = vmatpush1.msra.mxu0 0.0
        %605 = vmatprep.subr.mxu0 0.0
        %606 = vmatpush1.msra.mxu0 0.0
        %607 = vmatprep.subr.mxu0 0.0
        %608 = vmatpush1.msra.mxu0 0.0
        %609 = vmatprep.subr.mxu0 0.0
        %610 = vmatpush1.msra.mxu0 0.0
        %611 = vmatprep.subr.mxu0 0.0
        %612 = vmatpush1.msra.mxu0 0.0
        %613 = vmatprep.subr.mxu0 0.0
        %614 = vmatpush1.msra.mxu0 0.0
        %615 = vmatprep.subr.mxu0 0.0
        %616 = vmatpush1.msra.mxu0 0.0
        %617 = vmatprep.subr.mxu0 0.0
        %618 = vmatpush1.msra.mxu0 0.0
        %619 = vmatprep.subr.mxu0 0.0
        %620 = vmatpush1.msra.mxu0 0.0
        %621 = vmatprep.subr.mxu0 0.0
        %622 = vmatpush1.msra.mxu0 0.0
        %623 = vmatprep.subr.mxu0 0.0
        %624 = vmatpush1.msra.mxu0 0.0
        %625 = vmatprep.subr.mxu0 0.0
        %626 = vmatpush1.msra.mxu0 0.0
        %627 = vmatprep.subr.mxu0 0.0
        %628 = vmatpush1.msra.mxu0 0.0
        %629 = vmatprep.subr.mxu0 0.0
        %630 = vmatpush1.msra.mxu0 0.0
        %631 = vmatprep.subr.mxu0 0.0
        %632 = vmatpush1.msra.mxu0 0.0
        %633 = vmatprep.subr.mxu0 0.0
        %634 = vmatpush1.msra.mxu0 0.0
        %635 = vmatprep.subr.mxu0 0.0
        %636 = vmatpush1.msra.mxu0 0.0
        %637 = vmatprep.subr.mxu0 0.0
        %638 = vmatpush1.msra.mxu0 0.0
        %639 = vmatprep.subr.mxu0 0.0
        %640 = vmatpush1.msra.mxu0 0.0
        %641 = vmatprep.subr.mxu0 0.0
        %642 = vmatpush1.msra.mxu0 0.0
        %643 = vmatprep.subr.mxu0 0.0
        %644 = vmatpush1.msra.mxu0 0.0
        %645 = vmatprep.subr.mxu0 0.0
        %646 = vmatpush1.msra.mxu0 0.0
        %647 = vmatprep.subr.mxu0 0.0
        %648 = vmatpush1.msra.mxu0 0.0
        %649 = vmatprep.subr.mxu0 0.0
        %650 = vmatpush1.msra.mxu0 0.0
        %651 = vmatprep.mubr.f32.mxu0 0.0
        %652 = vmatmul.mubr.f32.gmra.mrb[0].mxu0 %v585
        %v653 = vpop.f32.mrb[0].mxu0
        %v654 = vadd.f32 %v582, %v653
        %v655 = vpop.f32.mrb[0].mxu0
        %v656 = vadd.f32 %v582, %v655
        %657 = vdwg.mxu0
        %v658 = vtanh.pop %v654
        %v659 = vtanh.pop %v656
        %v660 = vmul.f32 %v658, 0.5
        %v661 = vmul.f32 %v659, 0.5
        %v662 = vadd.f32 %v660, 0.5
        %v663 = vadd.f32 %v661, 0.5
        %v666 = vrot.slane %v662, 4
        %v667 = vrot.slane %v663, 4
        %v670 = vmul.f32 %v658, %v666
        %v671 = vmul.f32 %v659, %v667
        %s672 = scalar_lea.vmem %s5, 8
        %v673 = vld [vmem:[%s672] sm:$0x1f]
        %s674 = scalar_lea.vmem %s6, 8
        %v675 = vld [vmem:[%s674] sm:$0x1f]
        %677 = vset.pattern.permute.xlu0 0
        %678 = vperm.xlu0 %677, %v675
        %v679 = vpop.permute.xlu0 %678
        %v682 = vsel %vm469, %v673, 0
        %v685 = vsel %vm363, %v670, 0
        %v688 = vsel %vm363, %v671, 0
        %690 = vmatprep.subr.mxu0 %v688
        %691 = vmatpush1.msra.mxu0 %v685
        %692 = vmatprep.subr.mxu0 0.0
        %693 = vmatpush1.msra.mxu0 0.0
        %694 = vmatprep.subr.mxu0 0.0
        %695 = vmatpush1.msra.mxu0 0.0
        %696 = vmatprep.subr.mxu0 0.0
        %697 = vmatpush1.msra.mxu0 0.0
        %698 = vmatprep.subr.mxu0 0.0
        %699 = vmatpush1.msra.mxu0 0.0
        %700 = vmatprep.subr.mxu0 0.0
        %701 = vmatpush1.msra.mxu0 0.0
        %702 = vmatprep.subr.mxu0 0.0
        %703 = vmatpush1.msra.mxu0 0.0
        %704 = vmatprep.subr.mxu0 0.0
        %705 = vmatpush1.msra.mxu0 0.0
        %706 = vmatprep.subr.mxu0 0.0
        %707 = vmatpush1.msra.mxu0 0.0
        %708 = vmatprep.subr.mxu0 0.0
        %709 = vmatpush1.msra.mxu0 0.0
        %710 = vmatprep.subr.mxu0 0.0
        %711 = vmatpush1.msra.mxu0 0.0
        %712 = vmatprep.subr.mxu0 0.0
        %713 = vmatpush1.msra.mxu0 0.0
        %714 = vmatprep.subr.mxu0 0.0
        %715 = vmatpush1.msra.mxu0 0.0
        %716 = vmatprep.subr.mxu0 0.0
        %717 = vmatpush1.msra.mxu0 0.0
        %718 = vmatprep.subr.mxu0 0.0
        %719 = vmatpush1.msra.mxu0 0.0
        %720 = vmatprep.subr.mxu0 0.0
        %721 = vmatpush1.msra.mxu0 0.0
        %722 = vmatprep.subr.mxu0 0.0
        %723 = vmatpush1.msra.mxu0 0.0
        %724 = vmatprep.subr.mxu0 0.0
        %725 = vmatpush1.msra.mxu0 0.0
        %726 = vmatprep.subr.mxu0 0.0
        %727 = vmatpush1.msra.mxu0 0.0
        %728 = vmatprep.subr.mxu0 0.0
        %729 = vmatpush1.msra.mxu0 0.0
        %730 = vmatprep.subr.mxu0 0.0
        %731 = vmatpush1.msra.mxu0 0.0
        %732 = vmatprep.subr.mxu0 0.0
        %733 = vmatpush1.msra.mxu0 0.0
        %734 = vmatprep.subr.mxu0 0.0
        %735 = vmatpush1.msra.mxu0 0.0
        %736 = vmatprep.subr.mxu0 0.0
        %737 = vmatpush1.msra.mxu0 0.0
        %738 = vmatprep.subr.mxu0 0.0
        %739 = vmatpush1.msra.mxu0 0.0
        %740 = vmatprep.subr.mxu0 0.0
        %741 = vmatpush1.msra.mxu0 0.0
        %742 = vmatprep.subr.mxu0 0.0
        %743 = vmatpush1.msra.mxu0 0.0
        %744 = vmatprep.subr.mxu0 0.0
        %745 = vmatpush1.msra.mxu0 0.0
        %746 = vmatprep.subr.mxu0 0.0
        %747 = vmatpush1.msra.mxu0 0.0
        %748 = vmatprep.subr.mxu0 0.0
        %749 = vmatpush1.msra.mxu0 0.0
        %750 = vmatprep.subr.mxu0 0.0
        %751 = vmatpush1.msra.mxu0 0.0
        %752 = vmatprep.subr.mxu0 0.0
        %753 = vmatpush1.msra.mxu0 0.0
        %754 = vmatprep.mubr.f32.mxu0 0.0
        %755 = vmatmul.mubr.f32.gmra.mrb[0].mxu0 %v682
        %v756 = vpop.f32.mrb[0].mxu0
        %v757 = vadd.f32 %v679, %v756
        %v758 = vpop.f32.mrb[0].mxu0
        %v759 = vadd.f32 %v679, %v758
        %760 = vdwg.mxu0
        %v761 = vadd.f32 %v757, %v550
        %v762 = vadd.f32 %v759, %v551
        %v763 = vadd.f32 %v552, %v757
        %v764 = vadd.f32 %v553, %v759
        %s765 = scalar_lea.vmem [#allocation2], 8
        %v766 = vld [vmem:[%s765] sm:$0xf]
        %767 = vst [vmem:[%s765] sm:$0xf] %v762
        %768 = vrot.lane.b32.xlu0 %v761, 4
        %v769 = vpop.permute.xlu0 %768
        %770 = vrot.lane.b32.xlu0 %v762, 4
        %v771 = vpop.permute.xlu0 %770
        %vm772 = vcmp.lt.s32.totalorder %v344, 4
        %v773 = vsel %vm772, %v769, %v771
        %v774 = vsel %vm772, %v771, %v769
        %775 = vrot.lane.b32.xlu0 %v766, 4
        %v776 = vpop.permute.xlu0 %775
        %v777 = vsel %vm772, %v776, %v774
        %v780 = vrot.slane %v761, 4
        %v781 = vrot.slane %v762, 4
        %v784 = vsel %vm363, %v777, %v780
        %v785 = vsel %vm363, %v773, %v781
        %s786 = scalar_lea.vmem %s3, 16
        %v787 = vld [vmem:[%s786] sm:$0xff]
        %s788 = scalar_lea.vmem %s4, 16
        %v789 = vld [vmem:[%s788] sm:$0xff]
        %791 = vset.pattern.permute.xlu0 0
        %792 = vperm.xlu0 %791, %v789
        %v793 = vpop.permute.xlu0 %792
        %v796 = vsel %vm373, %v787, 0
        %798 = vmatprep.subr.mxu0 %v785
        %799 = vmatpush1.msra.mxu0 %v784
        %800 = vmatprep.subr.mxu0 0.0
        %801 = vmatpush1.msra.mxu0 0.0
        %802 = vmatprep.subr.mxu0 0.0
        %803 = vmatpush1.msra.mxu0 0.0
        %804 = vmatprep.subr.mxu0 0.0
        %805 = vmatpush1.msra.mxu0 0.0
        %806 = vmatprep.subr.mxu0 0.0
        %807 = vmatpush1.msra.mxu0 0.0
        %808 = vmatprep.subr.mxu0 0.0
        %809 = vmatpush1.msra.mxu0 0.0
        %810 = vmatprep.subr.mxu0 0.0
        %811 = vmatpush1.msra.mxu0 0.0
        %812 = vmatprep.subr.mxu0 0.0
        %813 = vmatpush1.msra.mxu0 0.0
        %814 = vmatprep.subr.mxu0 0.0
        %815 = vmatpush1.msra.mxu0 0.0
        %816 = vmatprep.subr.mxu0 0.0
        %817 = vmatpush1.msra.mxu0 0.0
        %818 = vmatprep.subr.mxu0 0.0
        %819 = vmatpush1.msra.mxu0 0.0
        %820 = vmatprep.subr.mxu0 0.0
        %821 = vmatpush1.msra.mxu0 0.0
        %822 = vmatprep.subr.mxu0 0.0
        %823 = vmatpush1.msra.mxu0 0.0
        %824 = vmatprep.subr.mxu0 0.0
        %825 = vmatpush1.msra.mxu0 0.0
        %826 = vmatprep.subr.mxu0 0.0
        %827 = vmatpush1.msra.mxu0 0.0
        %828 = vmatprep.subr.mxu0 0.0
        %829 = vmatpush1.msra.mxu0 0.0
        %830 = vmatprep.subr.mxu0 0.0
        %831 = vmatpush1.msra.mxu0 0.0
        %832 = vmatprep.subr.mxu0 0.0
        %833 = vmatpush1.msra.mxu0 0.0
        %834 = vmatprep.subr.mxu0 0.0
        %835 = vmatpush1.msra.mxu0 0.0
        %836 = vmatprep.subr.mxu0 0.0
        %837 = vmatpush1.msra.mxu0 0.0
        %838 = vmatprep.subr.mxu0 0.0
        %839 = vmatpush1.msra.mxu0 0.0
        %840 = vmatprep.subr.mxu0 0.0
        %841 = vmatpush1.msra.mxu0 0.0
        %842 = vmatprep.subr.mxu0 0.0
        %843 = vmatpush1.msra.mxu0 0.0
        %844 = vmatprep.subr.mxu0 0.0
        %845 = vmatpush1.msra.mxu0 0.0
        %846 = vmatprep.subr.mxu0 0.0
        %847 = vmatpush1.msra.mxu0 0.0
        %848 = vmatprep.subr.mxu0 0.0
        %849 = vmatpush1.msra.mxu0 0.0
        %850 = vmatprep.subr.mxu0 0.0
        %851 = vmatpush1.msra.mxu0 0.0
        %852 = vmatprep.subr.mxu0 0.0
        %853 = vmatpush1.msra.mxu0 0.0
        %854 = vmatprep.subr.mxu0 0.0
        %855 = vmatpush1.msra.mxu0 0.0
        %856 = vmatprep.subr.mxu0 0.0
        %857 = vmatpush1.msra.mxu0 0.0
        %858 = vmatprep.subr.mxu0 0.0
        %859 = vmatpush1.msra.mxu0 0.0
        %860 = vmatprep.subr.mxu0 0.0
        %861 = vmatpush1.msra.mxu0 0.0
        %862 = vmatprep.mubr.f32.mxu0 0.0
        %863 = vmatmul.mubr.f32.gmra.mrb[0].mxu0 %v796
        %v864 = vpop.f32.mrb[0].mxu0
        %v865 = vadd.f32 %v793, %v864
        %v866 = vpop.f32.mrb[0].mxu0
        %v867 = vadd.f32 %v793, %v866
        %868 = vdwg.mxu0
        %v869 = vtanh.pop %v865
        %v870 = vtanh.pop %v867
        %v871 = vmul.f32 %v869, 0.5
        %v872 = vmul.f32 %v870, 0.5
        %v873 = vadd.f32 %v871, 0.5
        %v874 = vadd.f32 %v872, 0.5
        %v877 = vrot.slane %v873, 4
        %v878 = vrot.slane %v874, 4
        %v881 = vmul.f32 %v869, %v877
        %v882 = vmul.f32 %v870, %v878
        %s883 = scalar_lea.vmem %s5, 16
        %v884 = vld [vmem:[%s883] sm:$0x1f]
        %s885 = scalar_lea.vmem %s6, 16
        %v886 = vld [vmem:[%s885] sm:$0x1f]
        %888 = vset.pattern.permute.xlu0 0
        %889 = vperm.xlu0 %888, %v886
        %v890 = vpop.permute.xlu0 %889
        %v893 = vsel %vm469, %v884, 0
        %v896 = vsel %vm363, %v881, 0
        %v899 = vsel %vm363, %v882, 0
        %901 = vmatprep.subr.mxu0 %v899
        %902 = vmatpush1.msra.mxu0 %v896
        %903 = vmatprep.subr.mxu0 0.0
        %904 = vmatpush1.msra.mxu0 0.0
        %905 = vmatprep.subr.mxu0 0.0
        %906 = vmatpush1.msra.mxu0 0.0
        %907 = vmatprep.subr.mxu0 0.0
        %908 = vmatpush1.msra.mxu0 0.0
        %909 = vmatprep.subr.mxu0 0.0
        %910 = vmatpush1.msra.mxu0 0.0
        %911 = vmatprep.subr.mxu0 0.0
        %912 = vmatpush1.msra.mxu0 0.0
        %913 = vmatprep.subr.mxu0 0.0
        %914 = vmatpush1.msra.mxu0 0.0
        %915 = vmatprep.subr.mxu0 0.0
        %916 = vmatpush1.msra.mxu0 0.0
        %917 = vmatprep.subr.mxu0 0.0
        %918 = vmatpush1.msra.mxu0 0.0
        %919 = vmatprep.subr.mxu0 0.0
        %920 = vmatpush1.msra.mxu0 0.0
        %921 = vmatprep.subr.mxu0 0.0
        %922 = vmatpush1.msra.mxu0 0.0
        %923 = vmatprep.subr.mxu0 0.0
        %924 = vmatpush1.msra.mxu0 0.0
        %925 = vmatprep.subr.mxu0 0.0
        %926 = vmatpush1.msra.mxu0 0.0
        %927 = vmatprep.subr.mxu0 0.0
        %928 = vmatpush1.msra.mxu0 0.0
        %929 = vmatprep.subr.mxu0 0.0
        %930 = vmatpush1.msra.mxu0 0.0
        %931 = vmatprep.subr.mxu0 0.0
        %932 = vmatpush1.msra.mxu0 0.0
        %933 = vmatprep.subr.mxu0 0.0
        %934 = vmatpush1.msra.mxu0 0.0
        %935 = vmatprep.subr.mxu0 0.0
        %936 = vmatpush1.msra.mxu0 0.0
        %937 = vmatprep.subr.mxu0 0.0
        %938 = vmatpush1.msra.mxu0 0.0
        %939 = vmatprep.subr.mxu0 0.0
        %940 = vmatpush1.msra.mxu0 0.0
        %941 = vmatprep.subr.mxu0 0.0
        %942 = vmatpush1.msra.mxu0 0.0
        %943 = vmatprep.subr.mxu0 0.0
        %944 = vmatpush1.msra.mxu0 0.0
        %945 = vmatprep.subr.mxu0 0.0
        %946 = vmatpush1.msra.mxu0 0.0
        %947 = vmatprep.subr.mxu0 0.0
        %948 = vmatpush1.msra.mxu0 0.0
        %949 = vmatprep.subr.mxu0 0.0
        %950 = vmatpush1.msra.mxu0 0.0
        %951 = vmatprep.subr.mxu0 0.0
        %952 = vmatpush1.msra.mxu0 0.0
        %953 = vmatprep.subr.mxu0 0.0
        %954 = vmatpush1.msra.mxu0 0.0
        %955 = vmatprep.subr.mxu0 0.0
        %956 = vmatpush1.msra.mxu0 0.0
        %957 = vmatprep.subr.mxu0 0.0
        %958 = vmatpush1.msra.mxu0 0.0
        %959 = vmatprep.subr.mxu0 0.0
        %960 = vmatpush1.msra.mxu0 0.0
        %961 = vmatprep.subr.mxu0 0.0
        %962 = vmatpush1.msra.mxu0 0.0
        %963 = vmatprep.subr.mxu0 0.0
        %964 = vmatpush1.msra.mxu0 0.0
        %965 = vmatprep.mubr.f32.mxu0 0.0
        %966 = vmatmul.mubr.f32.gmra.mrb[0].mxu0 %v893
        %v967 = vpop.f32.mrb[0].mxu0
        %v968 = vadd.f32 %v890, %v967
        %v969 = vpop.f32.mrb[0].mxu0
        %v970 = vadd.f32 %v890, %v969
        %971 = vdwg.mxu0
        %v972 = vadd.f32 %v968, %v761
        %v973 = vadd.f32 %v970, %v762
        %v974 = vadd.f32 %v763, %v968
        %v975 = vadd.f32 %v764, %v970
        %s976 = scalar_lea.vmem [#allocation2], 12
        %v977 = vld [vmem:[%s976] sm:$0xf]
        %978 = vst [vmem:[%s976] sm:$0xf] %v973
        %979 = vrot.lane.b32.xlu0 %v972, 1
        %v980 = vpop.permute.xlu0 %979
        %981 = vrot.lane.b32.xlu0 %v973, 1
        %v982 = vpop.permute.xlu0 %981
        %v983 = vsel %vm351, %v980, %v982
        %v984 = vsel %vm351, %v982, %v980
        %985 = vrot.lane.b32.xlu0 %v977, 1
        %v986 = vpop.permute.xlu0 %985
        %v987 = vsel %vm351, %v986, %v984
        %v990 = vrot.slane %v972, 4
        %v991 = vrot.slane %v973, 4
        %v994 = vsel %vm363, %v987, %v990
        %v995 = vsel %vm363, %v983, %v991
        %s996 = scalar_lea.vmem %s3, 24
        %v997 = vld [vmem:[%s996] sm:$0xff]
        %s998 = scalar_lea.vmem %s4, 24
        %v999 = vld [vmem:[%s998] sm:$0xff]
        %1001 = vset.pattern.permute.xlu0 0
        %1002 = vperm.xlu0 %1001, %v999
        %v1003 = vpop.permute.xlu0 %1002
        %v1006 = vsel %vm373, %v997, 0
        %1008 = vmatprep.subr.mxu0 %v995
        %1009 = vmatpush1.msra.mxu0 %v994
        %1010 = vmatprep.subr.mxu0 0.0
        %1011 = vmatpush1.msra.mxu0 0.0
        %1012 = vmatprep.subr.mxu0 0.0
        %1013 = vmatpush1.msra.mxu0 0.0
        %1014 = vmatprep.subr.mxu0 0.0
        %1015 = vmatpush1.msra.mxu0 0.0
        %1016 = vmatprep.subr.mxu0 0.0
        %1017 = vmatpush1.msra.mxu0 0.0
        %1018 = vmatprep.subr.mxu0 0.0
        %1019 = vmatpush1.msra.mxu0 0.0
        %1020 = vmatprep.subr.mxu0 0.0
        %1021 = vmatpush1.msra.mxu0 0.0
        %1022 = vmatprep.subr.mxu0 0.0
        %1023 = vmatpush1.msra.mxu0 0.0
        %1024 = vmatprep.subr.mxu0 0.0
        %1025 = vmatpush1.msra.mxu0 0.0
        %1026 = vmatprep.subr.mxu0 0.0
        %1027 = vmatpush1.msra.mxu0 0.0
        %1028 = vmatprep.subr.mxu0 0.0
        %1029 = vmatpush1.msra.mxu0 0.0
        %1030 = vmatprep.subr.mxu0 0.0
        %1031 = vmatpush1.msra.mxu0 0.0
        %1032 = vmatprep.subr.mxu0 0.0
        %1033 = vmatpush1.msra.mxu0 0.0
        %1034 = vmatprep.subr.mxu0 0.0
        %1035 = vmatpush1.msra.mxu0 0.0
        %1036 = vmatprep.subr.mxu0 0.0
        %1037 = vmatpush1.msra.mxu0 0.0
        %1038 = vmatprep.subr.mxu0 0.0
        %1039 = vmatpush1.msra.mxu0 0.0
        %1040 = vmatprep.subr.mxu0 0.0
        %1041 = vmatpush1.msra.mxu0 0.0
        %1042 = vmatprep.subr.mxu0 0.0
        %1043 = vmatpush1.msra.mxu0 0.0
        %1044 = vmatprep.subr.mxu0 0.0
        %1045 = vmatpush1.msra.mxu0 0.0
        %1046 = vmatprep.subr.mxu0 0.0
        %1047 = vmatpush1.msra.mxu0 0.0
        %1048 = vmatprep.subr.mxu0 0.0
        %1049 = vmatpush1.msra.mxu0 0.0
        %1050 = vmatprep.subr.mxu0 0.0
        %1051 = vmatpush1.msra.mxu0 0.0
        %1052 = vmatprep.subr.mxu0 0.0
        %1053 = vmatpush1.msra.mxu0 0.0
        %1054 = vmatprep.subr.mxu0 0.0
        %1055 = vmatpush1.msra.mxu0 0.0
        %1056 = vmatprep.subr.mxu0 0.0
        %1057 = vmatpush1.msra.mxu0 0.0
        %1058 = vmatprep.subr.mxu0 0.0
        %1059 = vmatpush1.msra.mxu0 0.0
        %1060 = vmatprep.subr.mxu0 0.0
        %1061 = vmatpush1.msra.mxu0 0.0
        %1062 = vmatprep.subr.mxu0 0.0
        %1063 = vmatpush1.msra.mxu0 0.0
        %1064 = vmatprep.subr.mxu0 0.0
        %1065 = vmatpush1.msra.mxu0 0.0
        %1066 = vmatprep.subr.mxu0 0.0
        %1067 = vmatpush1.msra.mxu0 0.0
        %1068 = vmatprep.subr.mxu0 0.0
        %1069 = vmatpush1.msra.mxu0 0.0
        %1070 = vmatprep.subr.mxu0 0.0
        %1071 = vmatpush1.msra.mxu0 0.0
        %1072 = vmatprep.mubr.f32.mxu0 0.0
        %1073 = vmatmul.mubr.f32.gmra.mrb[0].mxu0 %v1006
        %v1074 = vpop.f32.mrb[0].mxu0
        %v1075 = vadd.f32 %v1003, %v1074
        %v1076 = vpop.f32.mrb[0].mxu0
        %v1077 = vadd.f32 %v1003, %v1076
        %1078 = vdwg.mxu0
        %v1079 = vtanh.pop %v1075
        %v1080 = vtanh.pop %v1077
        %v1081 = vmul.f32 %v1079, 0.5
        %v1082 = vmul.f32 %v1080, 0.5
        %v1083 = vadd.f32 %v1081, 0.5
        %v1084 = vadd.f32 %v1082, 0.5
        %v1087 = vrot.slane %v1083, 4
        %v1088 = vrot.slane %v1084, 4
        %v1091 = vmul.f32 %v1079, %v1087
        %v1092 = vmul.f32 %v1080, %v1088
        %s1093 = scalar_lea.vmem %s5, 24
        %v1094 = vld [vmem:[%s1093] sm:$0x1f]
        %s1095 = scalar_lea.vmem %s6, 24
        %v1096 = vld [vmem:[%s1095] sm:$0x1f]
        %1098 = vset.pattern.permute.xlu0 0
        %1099 = vperm.xlu0 %1098, %v1096
        %v1100 = vpop.permute.xlu0 %1099
        %v1103 = vsel %vm469, %v1094, 0
        %v1106 = vsel %vm363, %v1091, 0
        %v1109 = vsel %vm363, %v1092, 0
        %1111 = vmatprep.subr.mxu0 %v1109
        %1112 = vmatpush1.msra.mxu0 %v1106
        %1113 = vmatprep.subr.mxu0 0.0
        %1114 = vmatpush1.msra.mxu0 0.0
        %1115 = vmatprep.subr.mxu0 0.0
        %1116 = vmatpush1.msra.mxu0 0.0
        %1117 = vmatprep.subr.mxu0 0.0
        %1118 = vmatpush1.msra.mxu0 0.0
        %1119 = vmatprep.subr.mxu0 0.0
        %1120 = vmatpush1.msra.mxu0 0.0
        %1121 = vmatprep.subr.mxu0 0.0
        %1122 = vmatpush1.msra.mxu0 0.0
        %1123 = vmatprep.subr.mxu0 0.0
        %1124 = vmatpush1.msra.mxu0 0.0
        %1125 = vmatprep.subr.mxu0 0.0
        %1126 = vmatpush1.msra.mxu0 0.0
        %1127 = vmatprep.subr.mxu0 0.0
        %1128 = vmatpush1.msra.mxu0 0.0
        %1129 = vmatprep.subr.mxu0 0.0
        %1130 = vmatpush1.msra.mxu0 0.0
        %1131 = vmatprep.subr.mxu0 0.0
        %1132 = vmatpush1.msra.mxu0 0.0
        %1133 = vmatprep.subr.mxu0 0.0
        %1134 = vmatpush1.msra.mxu0 0.0
        %1135 = vmatprep.subr.mxu0 0.0
        %1136 = vmatpush1.msra.mxu0 0.0
        %1137 = vmatprep.subr.mxu0 0.0
        %1138 = vmatpush1.msra.mxu0 0.0
        %1139 = vmatprep.subr.mxu0 0.0
        %1140 = vmatpush1.msra.mxu0 0.0
        %1141 = vmatprep.subr.mxu0 0.0
        %1142 = vmatpush1.msra.mxu0 0.0
        %1143 = vmatprep.subr.mxu0 0.0
        %1144 = vmatpush1.msra.mxu0 0.0
        %1145 = vmatprep.subr.mxu0 0.0
        %1146 = vmatpush1.msra.mxu0 0.0
        %1147 = vmatprep.subr.mxu0 0.0
        %1148 = vmatpush1.msra.mxu0 0.0
        %1149 = vmatprep.subr.mxu0 0.0
        %1150 = vmatpush1.msra.mxu0 0.0
        %1151 = vmatprep.subr.mxu0 0.0
        %1152 = vmatpush1.msra.mxu0 0.0
        %1153 = vmatprep.subr.mxu0 0.0
        %1154 = vmatpush1.msra.mxu0 0.0
        %1155 = vmatprep.subr.mxu0 0.0
        %1156 = vmatpush1.msra.mxu0 0.0
        %1157 = vmatprep.subr.mxu0 0.0
        %1158 = vmatpush1.msra.mxu0 0.0
        %1159 = vmatprep.subr.mxu0 0.0
        %1160 = vmatpush1.msra.mxu0 0.0
        %1161 = vmatprep.subr.mxu0 0.0
        %1162 = vmatpush1.msra.mxu0 0.0
        %1163 = vmatprep.subr.mxu0 0.0
        %1164 = vmatpush1.msra.mxu0 0.0
        %1165 = vmatprep.subr.mxu0 0.0
        %1166 = vmatpush1.msra.mxu0 0.0
        %1167 = vmatprep.subr.mxu0 0.0
        %1168 = vmatpush1.msra.mxu0 0.0
        %1169 = vmatprep.subr.mxu0 0.0
        %1170 = vmatpush1.msra.mxu0 0.0
        %1171 = vmatprep.subr.mxu0 0.0
        %1172 = vmatpush1.msra.mxu0 0.0
        %1173 = vmatprep.subr.mxu0 0.0
        %1174 = vmatpush1.msra.mxu0 0.0
        %1175 = vmatprep.mubr.f32.mxu0 0.0
        %1176 = vmatmul.mubr.f32.gmra.mrb[0].mxu0 %v1103
        %v1177 = vpop.f32.mrb[0].mxu0
        %v1178 = vadd.f32 %v1100, %v1177
        %v1179 = vpop.f32.mrb[0].mxu0
        %v1180 = vadd.f32 %v1100, %v1179
        %1181 = vdwg.mxu0
        %v1182 = vadd.f32 %v1178, %v972
        %v1183 = vadd.f32 %v1180, %v973
        %v1184 = vadd.f32 %v974, %v1178
        %v1185 = vadd.f32 %v975, %v1180
        %s1186 = scalar_lea.vmem [#allocation2], 16
        %v1187 = vld [vmem:[%s1186] sm:$0xf]
        %1188 = vst [vmem:[%s1186] sm:$0xf] %v1183
        %1189 = vrot.lane.b32.xlu0 %v1182, 2
        %v1190 = vpop.permute.xlu0 %1189
        %1191 = vrot.lane.b32.xlu0 %v1183, 2
        %v1192 = vpop.permute.xlu0 %1191
        %v1193 = vsel %vm561, %v1190, %v1192
        %v1194 = vsel %vm561, %v1192, %v1190
        %1195 = vrot.lane.b32.xlu0 %v1187, 2
        %v1196 = vpop.permute.xlu0 %1195
        %v1197 = vsel %vm561, %v1196, %v1194
        %v1200 = vrot.slane %v1182, 4
        %v1201 = vrot.slane %v1183, 4
        %v1204 = vsel %vm363, %v1197, %v1200
        %v1205 = vsel %vm363, %v1193, %v1201
        %s1206 = scalar_lea.vmem %s3, 32
        %v1207 = vld [vmem:[%s1206] sm:$0xff]
        %s1208 = scalar_lea.vmem %s4, 32
        %v1209 = vld [vmem:[%s1208] sm:$0xff]
        %1211 = vset.pattern.permute.xlu0 0
        %1212 = vperm.xlu0 %1211, %v1209
        %v1213 = vpop.permute.xlu0 %1212
        %v1216 = vsel %vm373, %v1207, 0
        %1218 = vmatprep.subr.mxu0 %v1205
        %1219 = vmatpush1.msra.mxu0 %v1204
        %1220 = vmatprep.subr.mxu0 0.0
        %1221 = vmatpush1.msra.mxu0 0.0
        %1222 = vmatprep.subr.mxu0 0.0
        %1223 = vmatpush1.msra.mxu0 0.0
        %1224 = vmatprep.subr.mxu0 0.0
        %1225 = vmatpush1.msra.mxu0 0.0
        %1226 = vmatprep.subr.mxu0 0.0
        %1227 = vmatpush1.msra.mxu0 0.0
        %1228 = vmatprep.subr.mxu0 0.0
        %1229 = vmatpush1.msra.mxu0 0.0
        %1230 = vmatprep.subr.mxu0 0.0
        %1231 = vmatpush1.msra.mxu0 0.0
        %1232 = vmatprep.subr.mxu0 0.0
        %1233 = vmatpush1.msra.mxu0 0.0
        %1234 = vmatprep.subr.mxu0 0.0
        %1235 = vmatpush1.msra.mxu0 0.0
        %1236 = vmatprep.subr.mxu0 0.0
        %1237 = vmatpush1.msra.mxu0 0.0
        %1238 = vmatprep.subr.mxu0 0.0
        %1239 = vmatpush1.msra.mxu0 0.0
        %1240 = vmatprep.subr.mxu0 0.0
        %1241 = vmatpush1.msra.mxu0 0.0
        %1242 = vmatprep.subr.mxu0 0.0
        %1243 = vmatpush1.msra.mxu0 0.0
        %1244 = vmatprep.subr.mxu0 0.0
        %1245 = vmatpush1.msra.mxu0 0.0
        %1246 = vmatprep.subr.mxu0 0.0
        %1247 = vmatpush1.msra.mxu0 0.0
        %1248 = vmatprep.subr.mxu0 0.0
        %1249 = vmatpush1.msra.mxu0 0.0
        %1250 = vmatprep.subr.mxu0 0.0
        %1251 = vmatpush1.msra.mxu0 0.0
        %1252 = vmatprep.subr.mxu0 0.0
        %1253 = vmatpush1.msra.mxu0 0.0
        %1254 = vmatprep.subr.mxu0 0.0
        %1255 = vmatpush1.msra.mxu0 0.0
        %1256 = vmatprep.subr.mxu0 0.0
        %1257 = vmatpush1.msra.mxu0 0.0
        %1258 = vmatprep.subr.mxu0 0.0
        %1259 = vmatpush1.msra.mxu0 0.0
        %1260 = vmatprep.subr.mxu0 0.0
        %1261 = vmatpush1.msra.mxu0 0.0
        %1262 = vmatprep.subr.mxu0 0.0
        %1263 = vmatpush1.msra.mxu0 0.0
        %1264 = vmatprep.subr.mxu0 0.0
        %1265 = vmatpush1.msra.mxu0 0.0
        %1266 = vmatprep.subr.mxu0 0.0
        %1267 = vmatpush1.msra.mxu0 0.0
        %1268 = vmatprep.subr.mxu0 0.0
        %1269 = vmatpush1.msra.mxu0 0.0
        %1270 = vmatprep.subr.mxu0 0.0
        %1271 = vmatpush1.msra.mxu0 0.0
        %1272 = vmatprep.subr.mxu0 0.0
        %1273 = vmatpush1.msra.mxu0 0.0
        %1274 = vmatprep.subr.mxu0 0.0
        %1275 = vmatpush1.msra.mxu0 0.0
        %1276 = vmatprep.subr.mxu0 0.0
        %1277 = vmatpush1.msra.mxu0 0.0
        %1278 = vmatprep.subr.mxu0 0.0
        %1279 = vmatpush1.msra.mxu0 0.0
        %1280 = vmatprep.subr.mxu0 0.0
        %1281 = vmatpush1.msra.mxu0 0.0
        %1282 = vmatprep.mubr.f32.mxu0 0.0
        %1283 = vmatmul.mubr.f32.gmra.mrb[0].mxu0 %v1216
        %v1284 = vpop.f32.mrb[0].mxu0
        %v1285 = vadd.f32 %v1213, %v1284
        %v1286 = vpop.f32.mrb[0].mxu0
        %v1287 = vadd.f32 %v1213, %v1286
        %1288 = vdwg.mxu0
        %v1289 = vtanh.pop %v1285
        %v1290 = vtanh.pop %v1287
        %v1291 = vmul.f32 %v1289, 0.5
        %v1292 = vmul.f32 %v1290, 0.5
        %v1293 = vadd.f32 %v1291, 0.5
        %v1294 = vadd.f32 %v1292, 0.5
        %v1297 = vrot.slane %v1293, 4
        %v1298 = vrot.slane %v1294, 4
        %v1301 = vmul.f32 %v1289, %v1297
        %v1302 = vmul.f32 %v1290, %v1298
        %s1303 = scalar_lea.vmem %s5, 32
        %v1304 = vld [vmem:[%s1303] sm:$0x1f]
        %s1305 = scalar_lea.vmem %s6, 32
        %v1306 = vld [vmem:[%s1305] sm:$0x1f]
        %1308 = vset.pattern.permute.xlu0 0
        %1309 = vperm.xlu0 %1308, %v1306
        %v1310 = vpop.permute.xlu0 %1309
        %v1313 = vsel %vm469, %v1304, 0
        %v1316 = vsel %vm363, %v1301, 0
        %v1319 = vsel %vm363, %v1302, 0
        %1321 = vmatprep.subr.mxu0 %v1319
        %1322 = vmatpush1.msra.mxu0 %v1316
        %1323 = vmatprep.subr.mxu0 0.0
        %1324 = vmatpush1.msra.mxu0 0.0
        %1325 = vmatprep.subr.mxu0 0.0
        %1326 = vmatpush1.msra.mxu0 0.0
        %1327 = vmatprep.subr.mxu0 0.0
        %1328 = vmatpush1.msra.mxu0 0.0
        %1329 = vmatprep.subr.mxu0 0.0
        %1330 = vmatpush1.msra.mxu0 0.0
        %1331 = vmatprep.subr.mxu0 0.0
        %1332 = vmatpush1.msra.mxu0 0.0
        %1333 = vmatprep.subr.mxu0 0.0
        %1334 = vmatpush1.msra.mxu0 0.0
        %1335 = vmatprep.subr.mxu0 0.0
        %1336 = vmatpush1.msra.mxu0 0.0
        %1337 = vmatprep.subr.mxu0 0.0
        %1338 = vmatpush1.msra.mxu0 0.0
        %1339 = vmatprep.subr.mxu0 0.0
        %1340 = vmatpush1.msra.mxu0 0.0
        %1341 = vmatprep.subr.mxu0 0.0
        %1342 = vmatpush1.msra.mxu0 0.0
        %1343 = vmatprep.subr.mxu0 0.0
        %1344 = vmatpush1.msra.mxu0 0.0
        %1345 = vmatprep.subr.mxu0 0.0
        %1346 = vmatpush1.msra.mxu0 0.0
        %1347 = vmatprep.subr.mxu0 0.0
        %1348 = vmatpush1.msra.mxu0 0.0
        %1349 = vmatprep.subr.mxu0 0.0
        %1350 = vmatpush1.msra.mxu0 0.0
        %1351 = vmatprep.subr.mxu0 0.0
        %1352 = vmatpush1.msra.mxu0 0.0
        %1353 = vmatprep.subr.mxu0 0.0
        %1354 = vmatpush1.msra.mxu0 0.0
        %1355 = vmatprep.subr.mxu0 0.0
        %1356 = vmatpush1.msra.mxu0 0.0
        %1357 = vmatprep.subr.mxu0 0.0
        %1358 = vmatpush1.msra.mxu0 0.0
        %1359 = vmatprep.subr.mxu0 0.0
        %1360 = vmatpush1.msra.mxu0 0.0
        %1361 = vmatprep.subr.mxu0 0.0
        %1362 = vmatpush1.msra.mxu0 0.0
        %1363 = vmatprep.subr.mxu0 0.0
        %1364 = vmatpush1.msra.mxu0 0.0
        %1365 = vmatprep.subr.mxu0 0.0
        %1366 = vmatpush1.msra.mxu0 0.0
        %1367 = vmatprep.subr.mxu0 0.0
        %1368 = vmatpush1.msra.mxu0 0.0
        %1369 = vmatprep.subr.mxu0 0.0
        %1370 = vmatpush1.msra.mxu0 0.0
        %1371 = vmatprep.subr.mxu0 0.0
        %1372 = vmatpush1.msra.mxu0 0.0
        %1373 = vmatprep.subr.mxu0 0.0
        %1374 = vmatpush1.msra.mxu0 0.0
        %1375 = vmatprep.subr.mxu0 0.0
        %1376 = vmatpush1.msra.mxu0 0.0
        %1377 = vmatprep.subr.mxu0 0.0
        %1378 = vmatpush1.msra.mxu0 0.0
        %1379 = vmatprep.subr.mxu0 0.0
        %1380 = vmatpush1.msra.mxu0 0.0
        %1381 = vmatprep.subr.mxu0 0.0
        %1382 = vmatpush1.msra.mxu0 0.0
        %1383 = vmatprep.subr.mxu0 0.0
        %1384 = vmatpush1.msra.mxu0 0.0
        %1385 = vmatprep.mubr.f32.mxu0 0.0
        %1386 = vmatmul.mubr.f32.gmra.mrb[0].mxu0 %v1313
        %v1387 = vpop.f32.mrb[0].mxu0
        %v1388 = vadd.f32 %v1310, %v1387
        %v1389 = vpop.f32.mrb[0].mxu0
        %v1390 = vadd.f32 %v1310, %v1389
        %1391 = vdwg.mxu0
        %v1392 = vadd.f32 %v1388, %v1182
        %v1393 = vadd.f32 %v1390, %v1183
        %v1394 = vadd.f32 %v1184, %v1388
        %v1395 = vadd.f32 %v1185, %v1390
        %s1396 = scalar_lea.vmem [#allocation2], 20
        %v1397 = vld [vmem:[%s1396] sm:$0xf]
        %1398 = vst [vmem:[%s1396] sm:$0xf] %v1393
        %1399 = vrot.lane.b32.xlu0 %v1392, 4
        %v1400 = vpop.permute.xlu0 %1399
        %1401 = vrot.lane.b32.xlu0 %v1393, 4
        %v1402 = vpop.permute.xlu0 %1401
        %v1403 = vsel %vm772, %v1400, %v1402
        %v1404 = vsel %vm772, %v1402, %v1400
        %1405 = vrot.lane.b32.xlu0 %v1397, 4
        %v1406 = vpop.permute.xlu0 %1405
        %v1407 = vsel %vm772, %v1406, %v1404
        %v1410 = vrot.slane %v1392, 4
        %v1411 = vrot.slane %v1393, 4
        %v1414 = vsel %vm363, %v1407, %v1410
        %v1415 = vsel %vm363, %v1403, %v1411
        %s1416 = scalar_lea.vmem %s3, 40
        %v1417 = vld [vmem:[%s1416] sm:$0xff]
        %s1418 = scalar_lea.vmem %s4, 40
        %v1419 = vld [vmem:[%s1418] sm:$0xff]
        %1421 = vset.pattern.permute.xlu0 0
        %1422 = vperm.xlu0 %1421, %v1419
        %v1423 = vpop.permute.xlu0 %1422
        %v1426 = vsel %vm373, %v1417, 0
        %1428 = vmatprep.subr.mxu0 %v1415
        %1429 = vmatpush1.msra.mxu0 %v1414
        %1430 = vmatprep.subr.mxu0 0.0
        %1431 = vmatpush1.msra.mxu0 0.0
        %1432 = vmatprep.subr.mxu0 0.0
        %1433 = vmatpush1.msra.mxu0 0.0
        %1434 = vmatprep.subr.mxu0 0.0
        %1435 = vmatpush1.msra.mxu0 0.0
        %1436 = vmatprep.subr.mxu0 0.0
        %1437 = vmatpush1.msra.mxu0 0.0
        %1438 = vmatprep.subr.mxu0 0.0
        %1439 = vmatpush1.msra.mxu0 0.0
        %1440 = vmatprep.subr.mxu0 0.0
        %1441 = vmatpush1.msra.mxu0 0.0
        %1442 = vmatprep.subr.mxu0 0.0
        %1443 = vmatpush1.msra.mxu0 0.0
        %1444 = vmatprep.subr.mxu0 0.0
        %1445 = vmatpush1.msra.mxu0 0.0
        %1446 = vmatprep.subr.mxu0 0.0
        %1447 = vmatpush1.msra.mxu0 0.0
        %1448 = vmatprep.subr.mxu0 0.0
        %1449 = vmatpush1.msra.mxu0 0.0
        %1450 = vmatprep.subr.mxu0 0.0
        %1451 = vmatpush1.msra.mxu0 0.0
        %1452 = vmatprep.subr.mxu0 0.0
        %1453 = vmatpush1.msra.mxu0 0.0
        %1454 = vmatprep.subr.mxu0 0.0
        %1455 = vmatpush1.msra.mxu0 0.0
        %1456 = vmatprep.subr.mxu0 0.0
        %1457 = vmatpush1.msra.mxu0 0.0
        %1458 = vmatprep.subr.mxu0 0.0
        %1459 = vmatpush1.msra.mxu0 0.0
        %1460 = vmatprep.subr.mxu0 0.0
        %1461 = vmatpush1.msra.mxu0 0.0
        %1462 = vmatprep.subr.mxu0 0.0
        %1463 = vmatpush1.msra.mxu0 0.0
        %1464 = vmatprep.subr.mxu0 0.0
        %1465 = vmatpush1.msra.mxu0 0.0
        %1466 = vmatprep.subr.mxu0 0.0
        %1467 = vmatpush1.msra.mxu0 0.0
        %1468 = vmatprep.subr.mxu0 0.0
        %1469 = vmatpush1.msra.mxu0 0.0
        %1470 = vmatprep.subr.mxu0 0.0
        %1471 = vmatpush1.msra.mxu0 0.0
        %1472 = vmatprep.subr.mxu0 0.0
        %1473 = vmatpush1.msra.mxu0 0.0
        %1474 = vmatprep.subr.mxu0 0.0
        %1475 = vmatpush1.msra.mxu0 0.0
        %1476 = vmatprep.subr.mxu0 0.0
        %1477 = vmatpush1.msra.mxu0 0.0
        %1478 = vmatprep.subr.mxu0 0.0
        %1479 = vmatpush1.msra.mxu0 0.0
        %1480 = vmatprep.subr.mxu0 0.0
        %1481 = vmatpush1.msra.mxu0 0.0
        %1482 = vmatprep.subr.mxu0 0.0
        %1483 = vmatpush1.msra.mxu0 0.0
        %1484 = vmatprep.subr.mxu0 0.0
        %1485 = vmatpush1.msra.mxu0 0.0
        %1486 = vmatprep.subr.mxu0 0.0
        %1487 = vmatpush1.msra.mxu0 0.0
        %1488 = vmatprep.subr.mxu0 0.0
        %1489 = vmatpush1.msra.mxu0 0.0
        %1490 = vmatprep.subr.mxu0 0.0
        %1491 = vmatpush1.msra.mxu0 0.0
        %1492 = vmatprep.mubr.f32.mxu0 0.0
        %1493 = vmatmul.mubr.f32.gmra.mrb[0].mxu0 %v1426
        %v1494 = vpop.f32.mrb[0].mxu0
        %v1495 = vadd.f32 %v1423, %v1494
        %v1496 = vpop.f32.mrb[0].mxu0
        %v1497 = vadd.f32 %v1423, %v1496
        %1498 = vdwg.mxu0
        %v1499 = vtanh.pop %v1495
        %v1500 = vtanh.pop %v1497
        %v1501 = vmul.f32 %v1499, 0.5
        %v1502 = vmul.f32 %v1500, 0.5
        %v1503 = vadd.f32 %v1501, 0.5
        %v1504 = vadd.f32 %v1502, 0.5
        %v1507 = vrot.slane %v1503, 4
        %v1508 = vrot.slane %v1504, 4
        %v1511 = vmul.f32 %v1499, %v1507
        %v1512 = vmul.f32 %v1500, %v1508
        %s1513 = scalar_lea.vmem %s5, 40
        %v1514 = vld [vmem:[%s1513] sm:$0x1f]
        %s1515 = scalar_lea.vmem %s6, 40
        %v1516 = vld [vmem:[%s1515] sm:$0x1f]
        %1518 = vset.pattern.permute.xlu0 0
        %1519 = vperm.xlu0 %1518, %v1516
        %v1520 = vpop.permute.xlu0 %1519
        %v1523 = vsel %vm469, %v1514, 0
        %v1526 = vsel %vm363, %v1511, 0
        %v1529 = vsel %vm363, %v1512, 0
        %1531 = vmatprep.subr.mxu0 %v1529
        %1532 = vmatpush1.msra.mxu0 %v1526
        %1533 = vmatprep.subr.mxu0 0.0
        %1534 = vmatpush1.msra.mxu0 0.0
        %1535 = vmatprep.subr.mxu0 0.0
        %1536 = vmatpush1.msra.mxu0 0.0
        %1537 = vmatprep.subr.mxu0 0.0
        %1538 = vmatpush1.msra.mxu0 0.0
        %1539 = vmatprep.subr.mxu0 0.0
        %1540 = vmatpush1.msra.mxu0 0.0
        %1541 = vmatprep.subr.mxu0 0.0
        %1542 = vmatpush1.msra.mxu0 0.0
        %1543 = vmatprep.subr.mxu0 0.0
        %1544 = vmatpush1.msra.mxu0 0.0
        %1545 = vmatprep.subr.mxu0 0.0
        %1546 = vmatpush1.msra.mxu0 0.0
        %1547 = vmatprep.subr.mxu0 0.0
        %1548 = vmatpush1.msra.mxu0 0.0
        %1549 = vmatprep.subr.mxu0 0.0
        %1550 = vmatpush1.msra.mxu0 0.0
        %1551 = vmatprep.subr.mxu0 0.0
        %1552 = vmatpush1.msra.mxu0 0.0
        %1553 = vmatprep.subr.mxu0 0.0
        %1554 = vmatpush1.msra.mxu0 0.0
        %1555 = vmatprep.subr.mxu0 0.0
        %1556 = vmatpush1.msra.mxu0 0.0
        %1557 = vmatprep.subr.mxu0 0.0
        %1558 = vmatpush1.msra.mxu0 0.0
        %1559 = vmatprep.subr.mxu0 0.0
        %1560 = vmatpush1.msra.mxu0 0.0
        %1561 = vmatprep.subr.mxu0 0.0
        %1562 = vmatpush1.msra.mxu0 0.0
        %1563 = vmatprep.subr.mxu0 0.0
        %1564 = vmatpush1.msra.mxu0 0.0
        %1565 = vmatprep.subr.mxu0 0.0
        %1566 = vmatpush1.msra.mxu0 0.0
        %1567 = vmatprep.subr.mxu0 0.0
        %1568 = vmatpush1.msra.mxu0 0.0
        %1569 = vmatprep.subr.mxu0 0.0
        %1570 = vmatpush1.msra.mxu0 0.0
        %1571 = vmatprep.subr.mxu0 0.0
        %1572 = vmatpush1.msra.mxu0 0.0
        %1573 = vmatprep.subr.mxu0 0.0
        %1574 = vmatpush1.msra.mxu0 0.0
        %1575 = vmatprep.subr.mxu0 0.0
        %1576 = vmatpush1.msra.mxu0 0.0
        %1577 = vmatprep.subr.mxu0 0.0
        %1578 = vmatpush1.msra.mxu0 0.0
        %1579 = vmatprep.subr.mxu0 0.0
        %1580 = vmatpush1.msra.mxu0 0.0
        %1581 = vmatprep.subr.mxu0 0.0
        %1582 = vmatpush1.msra.mxu0 0.0
        %1583 = vmatprep.subr.mxu0 0.0
        %1584 = vmatpush1.msra.mxu0 0.0
        %1585 = vmatprep.subr.mxu0 0.0
        %1586 = vmatpush1.msra.mxu0 0.0
        %1587 = vmatprep.subr.mxu0 0.0
        %1588 = vmatpush1.msra.mxu0 0.0
        %1589 = vmatprep.subr.mxu0 0.0
        %1590 = vmatpush1.msra.mxu0 0.0
        %1591 = vmatprep.subr.mxu0 0.0
        %1592 = vmatpush1.msra.mxu0 0.0
        %1593 = vmatprep.subr.mxu0 0.0
        %1594 = vmatpush1.msra.mxu0 0.0
        %1595 = vmatprep.mubr.f32.mxu0 0.0
        %1596 = vmatmul.mubr.f32.gmra.mrb[0].mxu0 %v1523
        %v1597 = vpop.f32.mrb[0].mxu0
        %v1598 = vadd.f32 %v1520, %v1597
        %v1599 = vpop.f32.mrb[0].mxu0
        %v1600 = vadd.f32 %v1520, %v1599
        %1601 = vdwg.mxu0
        %v1602 = vadd.f32 %v1394, %v1598
        %v1603 = vadd.f32 %v1395, %v1600
        %v1606 = vcombine.high %v1602, %v1603
        %v1608 = vunpack.c.l.s4 1966171168
        %v1609 = vunpack.c.0.s8 %v1608
        %v1610 = vlaneseq
        %v1611 = vshrl.u32 %v1610, 7
        %v1612 = vsub.s32 %v1609, %v1611
        %v1613 = vrot.slane %v1606, %v1612
        %v1615 = vunpack.c.l.s4 1966171168
        %v1616 = vunpack.c.0.s8 %v1615
        %v1617 = vlaneseq
        %v1618 = vshrl.u32 %v1617, 7
        %v1619 = vsub.s32 %v1616, %v1618
        %v1620 = vrot.slane %v1613, %v1619
        %v1622 = vlaneseq
        %vm1623 = vcmp.ge.s32.totalorder %v1622, 0
        %vm1624 = vcmp.lt.s32.totalorder %v1622, 256
        %vm1625 = vmand %vm1623, %vm1624
        %1626 = vst.msk [vmem:[%s294] sm:$0x3] %vm1625, %v1620
        %s1627 = sand.u32 %s197, 1
        %s1628 = scalar_lea.sflag [#allocation4], %s1627
        %s1629 = sand.u32 %s197, 1
        %s1630 = smul.addr %s1629, 2
        %s1631 = scalar_lea.vmem [#allocation3], %s1630
        // Predicated region
        $region53: #{tpu_custom_call.1} parent=47 // pred_check
          %p1632 = pneg %p207
        $region54: #{tpu_custom_call.1} parent=47 // pred_check_branch
          %1634 = sbr.rel (%p1632) target = $region56
        $region55: #{tpu_custom_call.1} parent=47 // pred_region
          %s1635 = smul.u32 2, %s26
          %s1637 = ssub.s32 32, 32
          %1638 = vsyncadd %s1628, %s1637
          %s1639 = smul.addr %s25, 4
          %s1640 = sadd.s32 %s1635, %s1639
          %s1641 = smul.addr %s1640, 16
          %s1642 = scalar_lea.hbm %s7, %s1641
          %s1644 = sshll.u32 %s1631, 4
          %s1645 = int_to_ptr.vmem [resolvable:$true] %s1644
          %1647 = dma.vmem_to_hbm [thread:$0]  %s1645, 32, %s1642, %s1628
        $region56: #{tpu_custom_call.1} parent=47 // pred_fallthru
          _
      $region48: #{tpu_custom_call.1} parent=5 // pred_fallthru
        _
      %p1648 = scmp.le.s32.totalorder 2, %s16
      // Predicated region
      $region57: #{tpu_custom_call.1} parent=5 // pred_check
        %p1649 = pneg %p1648
      $region58: #{tpu_custom_call.1} parent=5 // pred_check_branch
        %1651 = sbr.rel (%p1649) target = $region60
      $region59: #{tpu_custom_call.1} parent=5 // pred_region
        %s1652 = ssub.s32 %s16, 2
        // Predicated region
        $region61: #{tpu_custom_call.1} parent=59 // pred_check
          %p1653 = pneg %p213
        $region62: #{tpu_custom_call.1} parent=59 // pred_check_branch
          %1655 = sbr.rel (%p1653) target = $region64
        $region63: #{tpu_custom_call.1} parent=59 // pred_region
          %s1656 = sand.u32 %s198, 1
          %s1657 = scalar_lea.sflag [#allocation4], %s1656
          %s1658 = sand.u32 %s198, 1
          %s1659 = smul.addr %s1658, 2
          %s1660 = scalar_lea.vmem [#allocation3], %s1659
          %1661 = dma.done %s1657, 32
        $region64: #{tpu_custom_call.1} parent=59 // pred_fallthru
          _
      $region60: #{tpu_custom_call.1} parent=5 // pred_fallthru
        _
    $region6: #{tpu_custom_call.1} parent=1 // loop_footer
      %s20 = sadd.s32 1, %s16
    $region7: #{tpu_custom_call.1} parent=1 // loop_footer_branch
      %15 = sbr.rel target = $region3
    $region8: #{tpu_custom_call.1} parent=1 // loop_exit
      _
    %1662 = vsyncpa [#allocation4], 1
    %s1663 = scalar_lea.sflag [#allocation4], 1
    %1664 = vsyncpa %s1663, 1

</llo_original>
